<compile_context>
chip_gen: v6e
topology: v6e:2x2x1
jax: 0.10.0
libtpu: 0.0.40
codegen_flags: <defaults>
</compile_context>

<pallas_src>
import numpy as np
import jax
import jax.numpy as jnp
from jax import lax
from jax.experimental import pallas as pl
from jax.experimental.pallas import tpu as pltpu

BN_EPS = 1e-5
NEG_BIG = 1e30   # additive max-pool mask (not -inf: avoids inf/nan edge cases)

# Fixed architecture sample:
#   node0: cell_x = MaxPool3x3(pprev_), cell_y = AvgPool3x3(prev_)
#   node1: cell_x = Identity(pprev_),   cell_y = AvgPool3x3(prev_)
# => nodes_used_mask = [True, True, False, False]; unused nodes = [node0, node1]
ARCH_UNUSED_IDX = (2, 3)


# --------------------------------------------------------------------------
# Compile-time pooling constants (numpy; shipped as one small f32 input)
#   rows: [mask_x_left, mask_x_right, mask_y_up, mask_y_down, 1/count, 0, 0, 0]
# --------------------------------------------------------------------------
def _pool_constants(n, h, w):
    hw = h * w
    lanes = n * hw
    j = np.arange(lanes)
    x_idx = (j % hw) % w
    y_idx = (j % hw) // w
    mxl = (x_idx >= 1).astype(np.float32)          # left neighbour (dx=-1) valid
    mxr = (x_idx <= w - 2).astype(np.float32)      # right neighbour (dx=+1) valid
    myu = (y_idx >= 1).astype(np.float32)          # upper neighbour (dy=-1) valid
    myd = (y_idx <= h - 2).astype(np.float32)      # lower neighbour (dy=+1) valid
    inv_cnt = 1.0 / ((1.0 + mxl + mxr) * (1.0 + myu + myd))   # separable count
    pc = np.zeros((8, lanes), np.float32)
    pc[0], pc[1], pc[2], pc[3], pc[4] = mxl, mxr, myu, myd, inv_cnt
    return pc


# --------------------------------------------------------------------------
# Fused Pallas kernel (whole ENASLayer forward)
# --------------------------------------------------------------------------
def _make_enas_kernel(n, h, w, c_out, calib0, calib1):
    hw = h * w
    lanes = n * hw                 # lane extent of the internal (C, N*H*W) layout
    inv_rows = 1.0 / float(lanes)

    def _bn_rows(y):
        # BatchNorm2d(affine=False), training-mode batch stats per channel (= row).
        # Mean-shifted two-pass variance for numerical robustness.
        mean = jnp.sum(y, axis=1, keepdims=True) * inv_rows
        d = y - mean
        var = jnp.sum(d * d, axis=1, keepdims=True) * inv_rows
        return d * lax.rsqrt(var + BN_EPS)

    def _rows(x_ref, relu):
        # Re-layout NCHW (N, Cin, H*W) -> lane-dense (Cin, N*H*W) by lane concat.
        slabs = [x_ref[b] for b in range(n)]
        x = jnp.concatenate(slabs, axis=1) if n > 1 else slabs[0]
        return jnp.maximum(x, 0.0) if relu else x

    def kernel(*refs):
        it = iter(refs)
        pp_ref = next(it)
        pv_ref = next(it)
        pc_ref = next(it)                         # (8, lanes) pooling constants
        w0_ref = next(it) if calib0 else None
        w1_ref = next(it) if calib1 else None
        wf_ref = next(it)                         # (Cout, 2*Cout) fused final conv
        o_ref = next(it)

        # ---- calibrations (StdConv = ReLU -> 1x1 conv -> BN), one dot each ----
        if calib0:
            pp = _bn_rows(jnp.dot(w0_ref[...], _rows(pp_ref, True),
                                  preferred_element_type=jnp.float32))
        else:
            pp = _rows(pp_ref, False)
        if calib1:
            pv = _bn_rows(jnp.dot(w1_ref[...], _rows(pv_ref, True),
                                  preferred_element_type=jnp.float32))
        else:
            pv = _rows(pv_ref, False)

        # ---- compile-time pooling constants ----
        mxl = pc_ref[0:1, :]
        mxr = pc_ref[1:2, :]
        myu = pc_ref[2:3, :]
        myd = pc_ref[3:4, :]
        inv_cnt = pc_ref[4:5, :]
        # additive masks for the max pool (0 where valid, -1e30 where invalid)
        nxl = (mxl - 1.0) * NEG_BIG
        nxr = (mxr - 1.0) * NEG_BIG
        nyu = (myu - 1.0) * NEG_BIG
        nyd = (myd - 1.0) * NEG_BIG

        # ---- separable 3x3 stride-1 pad-1 pools (horizontal pass, then vertical).
        # shifted[j] = x[j + s] via roll((-s) % lanes); wrap-around lanes are
        # exactly the masked ones and the centre tap is always valid. ----

        # max pool on pp
        maxh = jnp.maximum(pp, jnp.maximum(pltpu.roll(pp, 1, 1) + nxl,
                                           pltpu.roll(pp, lanes - 1, 1) + nxr))
        maxp = jnp.maximum(maxh, jnp.maximum(pltpu.roll(maxh, w, 1) + nyu,
                                             pltpu.roll(maxh, lanes - w, 1) + nyd))

        # avg pool (count_include_pad=False) on pv; sum and count both factorize
        sumh = pv + pltpu.roll(pv, 1, 1) * mxl + pltpu.roll(pv, lanes - 1, 1) * mxr
        sump = (sumh + pltpu.roll(sumh, w, 1) * myu
                + pltpu.roll(sumh, lanes - w, 1) * myd)
        avgp = sump * inv_cnt

        node0 = maxp + avgp        # Node 0: max_pool3x3(pprev_) + avg_pool3x3(prev_)
        node1 = pp + avgp          # Node 1: identity(pprev_)    + avg_pool3x3(prev_)

        # ---- unused-node concat + ReLU + 1x1 conv fused as ONE (Cout, 2*Cout)
        # matmul over the stacked (2*Cout, lanes) slab, then BN(affine=False). ----
        stacked = jnp.concatenate([jnp.maximum(node0, 0.0),
                                   jnp.maximum(node1, 0.0)], axis=0)
        y = _bn_rows(jnp.dot(wf_ref[...], stacked,
                             preferred_element_type=jnp.float32))

        # ---- write back as (N, Cout, H*W): lane-aligned static slices ----
        for b in range(n):
            o_ref[b] = y[:, b * hw:(b + 1) * hw]

    return kernel


# --------------------------------------------------------------------------
# Parameters (deterministic, in-script; conv weights stored as (Cout, Cin))
# --------------------------------------------------------------------------
def init_params(key, num_nodes, c_pp, c_p, c_out):
    k0, k1, k2 = jax.random.split(key, 3)
    params = {}
    if c_pp != c_out:
        params["w_pre0"] = jax.random.normal(k0, (c_out, c_pp), jnp.float32) * (2.0 / c_pp) ** 0.5
    if c_p != c_out:
        params["w_pre1"] = jax.random.normal(k1, (c_out, c_p), jnp.float32) * (2.0 / c_p) ** 0.5
    # final_conv_w: (Cout, num_nodes+2, Cout, 1, 1), kaiming_normal_ (fan_in mode)
    fan_in = (num_nodes + 2) * c_out
    params["final_conv_w"] = (
        jax.random.normal(k2, (c_out, num_nodes + 2, c_out, 1, 1), jnp.float32)
        * (2.0 / fan_in) ** 0.5
    )
    return params


# --------------------------------------------------------------------------
# ENASLayer forward wrapper (single pallas_call, no transposes / pads in XLA)
# --------------------------------------------------------------------------
def enas_layer_forward(params, pprev, prev, num_nodes=2, out_channels=16):
    n, c_pp, h, w = pprev.shape
    _, c_p, h2, w2 = prev.shape
    assert (h, w) == (h2, w2)
    hw = h * w
    lanes = n * hw

    calib0 = "w_pre0" in params
    calib1 = "w_pre1" in params

    # conv_weight = final_conv_w[:, ~nodes_used_mask].view(Cout, 2*Cout, 1, 1)
    fw = params["final_conv_w"][:, :, :, 0, 0]                           # (Cout, nn+2, Cout)
    w_final = jnp.concatenate([fw[:, i, :] for i in ARCH_UNUSED_IDX], axis=1)  # (Cout, 2*Cout)

    pool_const = _pool_constants(n, h, w)                                # numpy (8, lanes)

    args = [pprev.reshape(n, c_pp, hw).astype(jnp.float32),
            prev.reshape(n, c_p, hw).astype(jnp.float32),
            jnp.asarray(pool_const)]
    if calib0:
        args.append(params["w_pre0"])
    if calib1:
        args.append(params["w_pre1"])
    args.append(w_final)

    # Advisory cost estimate so XLA schedules neighbouring ops around this call.
    flops = int(2 * lanes * out_channels
                * ((c_pp if calib0 else 0) + (c_p if calib1 else 0) + 2 * out_channels)
                + 40 * out_channels * lanes)
    bytes_accessed = int(4 * (n * (c_pp + c_p + out_channels) * hw
                              + pool_const.size + w_final.size
                              + (out_channels * c_pp if calib0 else 0)
                              + (out_channels * c_p if calib1 else 0)))

    out = pl.pallas_call(
        _make_enas_kernel(n, h, w, out_channels, calib0, calib1),
        out_shape=jax.ShapeDtypeStruct((n, out_channels, hw), jnp.float32),
        cost_estimate=pl.CostEstimate(flops=flops,
                                      transcendentals=3 * out_channels,
                                      bytes_accessed=bytes_accessed),
    )(*args)
    return prev, out.reshape(n, out_channels, h, w)


# --------------------------------------------------------------------------
# Pure-JAX reference (same fixed architecture) for a correctness check
# --------------------------------------------------------------------------
def _reference_forward(params, pprev, prev, out_channels):
    hi = lax.Precision.HIGHEST

    def bn(x):
        mean = jnp.mean(x, axis=(0, 2, 3), keepdims=True)
        var = jnp.mean(jnp.square(x - mean), axis=(0, 2, 3), keepdims=True)
        return (x - mean) * lax.rsqrt(var + BN_EPS)

    def conv1x1(x, wt):  # x: (N,Cin,H,W), wt: (Cout,Cin)
        return jnp.einsum("oc,nchw->nohw", wt, x, precision=hi)

    def calibrate(x, key):
        if key not in params:
            return x
        return bn(conv1x1(jnp.maximum(x, 0.0), params[key]))

    def pool3(x, mode):
        n, c, h, w = x.shape
        pad_val = -jnp.inf if mode == "max" else 0.0
        xp = jnp.pad(x, ((0, 0), (0, 0), (1, 1), (1, 1)), constant_values=pad_val)
        ones = jnp.pad(jnp.ones((1, 1, h, w), x.dtype), ((0, 0), (0, 0), (1, 1), (1, 1)))
        acc, cnt = None, None
        for dy in range(3):
            for dx in range(3):
                win = xp[:, :, dy:dy + h, dx:dx + w]
                cw = ones[:, :, dy:dy + h, dx:dx + w]
                if acc is None:
                    acc, cnt = win, cw
                else:
                    acc = jnp.maximum(acc, win) if mode == "max" else acc + win
                    cnt = cnt + cw
        return acc if mode == "max" else acc / cnt

    pprev_ = calibrate(pprev.astype(jnp.float32), "w_pre0")
    prev_ = calibrate(prev.astype(jnp.float32), "w_pre1")

    avg_prev = pool3(prev_, "avg")
    node0 = pool3(pprev_, "max") + avg_prev
    node1 = pprev_ + avg_prev
    unused = jnp.maximum(jnp.concatenate([node0, node1], axis=1), 0.0)

    fw = params["final_conv_w"][:, :, :, 0, 0]
    w_sel = jnp.stack([fw[:, i, :] for i in ARCH_UNUSED_IDX], axis=1).reshape(out_channels, -1)
    out = bn(jnp.einsum("oc,nchw->nohw", w_sel, unused, precision=hi))
    return prev, out


# --------------------------------------------------------------------------
if __name__ == "__main__":
    num_nodes = 2
    in_channels_pp, in_channels_p, out_channels = 8, 12, 16
    N, H, W = 2, 16, 16

    key = jax.random.PRNGKey(0)
    kpp, kp, kparam = jax.random.split(key, 3)
    pprev = jax.random.normal(kpp, (N, in_channels_pp, H, W), jnp.float32)
    prev = jax.random.normal(kp, (N, in_channels_p, H, W), jnp.float32)
    params = init_params(kparam, num_nodes, in_channels_pp, in_channels_p, out_channels)

    fwd = jax.jit(
        lambda pp, p: enas_layer_forward(params, pp, p, num_nodes, out_channels)
    )
    prev_out, bn_out = fwd(pprev, prev)
    jax.block_until_ready((prev_out, bn_out))

    assert prev_out.shape == prev.shape
    assert bn_out.shape == (N, out_channels, H, W)
    assert bool(jnp.all(jnp.isfinite(bn_out)))

    # Correctness check against the pure-JAX reference.  Tolerance allows for
    # possible MXU f32 matmul-precision differences; structural bugs are O(1).
    _, ref_out = _reference_forward(params, pprev, prev, out_channels)
    max_err = float(jnp.max(jnp.abs(bn_out - ref_out)))
    assert max_err < 3e-2, f"kernel/reference mismatch: max abs err = {max_err}"

    print("KERNEL_OK")
</pallas_src>

<mosaic_0001>
module attributes {stable_mosaic.version = 11 : i64} {
  func.func @kernel(%arg0: memref<2x8x256xf32, #tpu.memory_space<vmem>>, %arg1: memref<2x12x256xf32, #tpu.memory_space<vmem>>, %arg2: memref<8x512xf32, #tpu.memory_space<vmem>>, %arg3: memref<16x8xf32, #tpu.memory_space<vmem>>, %arg4: memref<16x12xf32, #tpu.memory_space<vmem>>, %arg5: memref<16x32xf32, #tpu.memory_space<vmem>>, %arg6: memref<2x16x256xf32, #tpu.memory_space<vmem>>) attributes {dimension_semantics = [], scalar_prefetch = 0 : i64, scratch_operands = 0 : i64, tpu.core_type = #tpu.core_type<tc>} {
    %c0 = arith.constant 0 : index
    %c0_0 = arith.constant 0 : index
    %0 = vector.load %arg3[%c0, %c0_0] : memref<16x8xf32, #tpu.memory_space<vmem>>, vector<16x8xf32>
    %c0_1 = arith.constant 0 : index
    %c0_2 = arith.constant 0 : index
    %c0_3 = arith.constant 0 : index
    %1 = vector.load %arg0[%c0_1, %c0_2, %c0_3] : memref<2x8x256xf32, #tpu.memory_space<vmem>>, vector<1x8x256xf32>
    %2 = vector.shape_cast %1 : vector<1x8x256xf32> to vector<8x256xf32>
    %c1 = arith.constant 1 : index
    %c0_4 = arith.constant 0 : index
    %c0_5 = arith.constant 0 : index
    %3 = vector.load %arg0[%c1, %c0_4, %c0_5] : memref<2x8x256xf32, #tpu.memory_space<vmem>>, vector<1x8x256xf32>
    %4 = vector.shape_cast %3 : vector<1x8x256xf32> to vector<8x256xf32>
    %5 = tpu.concatenate %2, %4 in 1 : vector<8x256xf32>, vector<8x256xf32> -> vector<8x512xf32>
    %cst = arith.constant 0.000000e+00 : f32
    %6 = vector.broadcast %cst : f32 to vector<8x512xf32>
    %7 = arith.maximumf %5, %6 : vector<8x512xf32>
    %cst_6 = arith.constant dense<0.000000e+00> : vector<16x512xf32>
    %8 = tpu.matmul %0, %7, %cst_6 {dimension_numbers = #tpu.dot_dimension_numbers<[1], [0], [0], [1], [0, 0, 1, 1], [], []>} : vector<16x8xf32>, vector<8x512xf32>, vector<16x512xf32> -> vector<16x512xf32>
    %cst_7 = arith.constant dense<0.000000e+00> : vector<16xf32>
    %9 = vector.multi_reduction <add>, %8, %cst_7 [1] : vector<16x512xf32> to vector<16xf32>
    %10 = vector.shape_cast %9 : vector<16xf32> to vector<16x1xf32>
    %cst_8 = arith.constant 0.001953125 : f32
    %11 = vector.broadcast %cst_8 : f32 to vector<16x1xf32>
    %12 = arith.mulf %10, %11 : vector<16x1xf32>
    %13 = vector.broadcast %12 : vector<16x1xf32> to vector<16x512xf32>
    %14 = arith.subf %8, %13 : vector<16x512xf32>
    %15 = arith.mulf %14, %14 : vector<16x512xf32>
    %cst_9 = arith.constant dense<0.000000e+00> : vector<16xf32>
    %16 = vector.multi_reduction <add>, %15, %cst_9 [1] : vector<16x512xf32> to vector<16xf32>
    %17 = vector.shape_cast %16 : vector<16xf32> to vector<16x1xf32>
    %cst_10 = arith.constant 0.001953125 : f32
    %18 = vector.broadcast %cst_10 : f32 to vector<16x1xf32>
    %19 = arith.mulf %17, %18 : vector<16x1xf32>
    %cst_11 = arith.constant 9.99999974E-6 : f32
    %20 = vector.broadcast %cst_11 : f32 to vector<16x1xf32>
    %21 = arith.addf %19, %20 : vector<16x1xf32>
    %22 = math.rsqrt %21 : vector<16x1xf32>
    %23 = vector.broadcast %22 : vector<16x1xf32> to vector<16x512xf32>
    %24 = arith.mulf %14, %23 : vector<16x512xf32>
    %c0_12 = arith.constant 0 : index
    %c0_13 = arith.constant 0 : index
    %25 = vector.load %arg4[%c0_12, %c0_13] : memref<16x12xf32, #tpu.memory_space<vmem>>, vector<16x12xf32>
    %c0_14 = arith.constant 0 : index
    %c0_15 = arith.constant 0 : index
    %c0_16 = arith.constant 0 : index
    %26 = vector.load %arg1[%c0_14, %c0_15, %c0_16] : memref<2x12x256xf32, #tpu.memory_space<vmem>>, vector<1x12x256xf32>
    %27 = vector.shape_cast %26 : vector<1x12x256xf32> to vector<12x256xf32>
    %c1_17 = arith.constant 1 : index
    %c0_18 = arith.constant 0 : index
    %c0_19 = arith.constant 0 : index
    %28 = vector.load %arg1[%c1_17, %c0_18, %c0_19] : memref<2x12x256xf32, #tpu.memory_space<vmem>>, vector<1x12x256xf32>
    %29 = vector.shape_cast %28 : vector<1x12x256xf32> to vector<12x256xf32>
    %30 = tpu.concatenate %27, %29 in 1 : vector<12x256xf32>, vector<12x256xf32> -> vector<12x512xf32>
    %cst_20 = arith.constant 0.000000e+00 : f32
    %31 = vector.broadcast %cst_20 : f32 to vector<12x512xf32>
    %32 = arith.maximumf %30, %31 : vector<12x512xf32>
    %cst_21 = arith.constant dense<0.000000e+00> : vector<16x512xf32>
    %33 = tpu.matmul %25, %32, %cst_21 {dimension_numbers = #tpu.dot_dimension_numbers<[1], [0], [0], [1], [0, 0, 1, 1], [], []>} : vector<16x12xf32>, vector<12x512xf32>, vector<16x512xf32> -> vector<16x512xf32>
    %cst_22 = arith.constant dense<0.000000e+00> : vector<16xf32>
    %34 = vector.multi_reduction <add>, %33, %cst_22 [1] : vector<16x512xf32> to vector<16xf32>
    %35 = vector.shape_cast %34 : vector<16xf32> to vector<16x1xf32>
    %cst_23 = arith.constant 0.001953125 : f32
    %36 = vector.broadcast %cst_23 : f32 to vector<16x1xf32>
    %37 = arith.mulf %35, %36 : vector<16x1xf32>
    %38 = vector.broadcast %37 : vector<16x1xf32> to vector<16x512xf32>
    %39 = arith.subf %33, %38 : vector<16x512xf32>
    %40 = arith.mulf %39, %39 : vector<16x512xf32>
    %cst_24 = arith.constant dense<0.000000e+00> : vector<16xf32>
    %41 = vector.multi_reduction <add>, %40, %cst_24 [1] : vector<16x512xf32> to vector<16xf32>
    %42 = vector.shape_cast %41 : vector<16xf32> to vector<16x1xf32>
    %cst_25 = arith.constant 0.001953125 : f32
    %43 = vector.broadcast %cst_25 : f32 to vector<16x1xf32>
    %44 = arith.mulf %42, %43 : vector<16x1xf32>
    %cst_26 = arith.constant 9.99999974E-6 : f32
    %45 = vector.broadcast %cst_26 : f32 to vector<16x1xf32>
    %46 = arith.addf %44, %45 : vector<16x1xf32>
    %47 = math.rsqrt %46 : vector<16x1xf32>
    %48 = vector.broadcast %47 : vector<16x1xf32> to vector<16x512xf32>
    %49 = arith.mulf %39, %48 : vector<16x512xf32>
    %c0_27 = arith.constant 0 : index
    %c0_28 = arith.constant 0 : index
    %50 = vector.load %arg2[%c0_27, %c0_28] : memref<8x512xf32, #tpu.memory_space<vmem>>, vector<1x512xf32>
    %c1_29 = arith.constant 1 : index
    %c0_30 = arith.constant 0 : index
    %51 = vector.load %arg2[%c1_29, %c0_30] : memref<8x512xf32, #tpu.memory_space<vmem>>, vector<1x512xf32>
    %c2 = arith.constant 2 : index
    %c0_31 = arith.constant 0 : index
    %52 = vector.load %arg2[%c2, %c0_31] : memref<8x512xf32, #tpu.memory_space<vmem>>, vector<1x512xf32>
    %c3 = arith.constant 3 : index
    %c0_32 = arith.constant 0 : index
    %53 = vector.load %arg2[%c3, %c0_32] : memref<8x512xf32, #tpu.memory_space<vmem>>, vector<1x512xf32>
    %c4 = arith.constant 4 : index
    %c0_33 = arith.constant 0 : index
    %54 = vector.load %arg2[%c4, %c0_33] : memref<8x512xf32, #tpu.memory_space<vmem>>, vector<1x512xf32>
    %cst_34 = arith.constant 1.000000e+00 : f32
    %55 = vector.broadcast %cst_34 : f32 to vector<1x512xf32>
    %56 = arith.subf %50, %55 : vector<1x512xf32>
    %cst_35 = arith.constant 1.000000e+30 : f32
    %57 = vector.broadcast %cst_35 : f32 to vector<1x512xf32>
    %58 = arith.mulf %56, %57 : vector<1x512xf32>
    %cst_36 = arith.constant 1.000000e+00 : f32
    %59 = vector.broadcast %cst_36 : f32 to vector<1x512xf32>
    %60 = arith.subf %51, %59 : vector<1x512xf32>
    %cst_37 = arith.constant 1.000000e+30 : f32
    %61 = vector.broadcast %cst_37 : f32 to vector<1x512xf32>
    %62 = arith.mulf %60, %61 : vector<1x512xf32>
    %cst_38 = arith.constant 1.000000e+00 : f32
    %63 = vector.broadcast %cst_38 : f32 to vector<1x512xf32>
    %64 = arith.subf %52, %63 : vector<1x512xf32>
    %cst_39 = arith.constant 1.000000e+30 : f32
    %65 = vector.broadcast %cst_39 : f32 to vector<1x512xf32>
    %66 = arith.mulf %64, %65 : vector<1x512xf32>
    %cst_40 = arith.constant 1.000000e+00 : f32
    %67 = vector.broadcast %cst_40 : f32 to vector<1x512xf32>
    %68 = arith.subf %53, %67 : vector<1x512xf32>
    %cst_41 = arith.constant 1.000000e+30 : f32
    %69 = vector.broadcast %cst_41 : f32 to vector<1x512xf32>
    %70 = arith.mulf %68, %69 : vector<1x512xf32>
    %c1_i32 = arith.constant 1 : i32
    %71 = tpu.dynamic_rotate %24 by %c1_i32 dim 1 : vector<16x512xf32>, i32 -> vector<16x512xf32>
    %72 = vector.broadcast %58 : vector<1x512xf32> to vector<16x512xf32>
    %73 = arith.addf %71, %72 : vector<16x512xf32>
    %c511_i32 = arith.constant 511 : i32
    %74 = tpu.dynamic_rotate %24 by %c511_i32 dim 1 : vector<16x512xf32>, i32 -> vector<16x512xf32>
    %75 = vector.broadcast %62 : vector<1x512xf32> to vector<16x512xf32>
    %76 = arith.addf %74, %75 : vector<16x512xf32>
    %77 = arith.maximumf %73, %76 : vector<16x512xf32>
    %78 = arith.maximumf %24, %77 : vector<16x512xf32>
    %c16_i32 = arith.constant 16 : i32
    %79 = tpu.dynamic_rotate %78 by %c16_i32 dim 1 : vector<16x512xf32>, i32 -> vector<16x512xf32>
    %80 = vector.broadcast %66 : vector<1x512xf32> to vector<16x512xf32>
    %81 = arith.addf %79, %80 : vector<16x512xf32>
    %c496_i32 = arith.constant 496 : i32
    %82 = tpu.dynamic_rotate %78 by %c496_i32 dim 1 : vector<16x512xf32>, i32 -> vector<16x512xf32>
    %83 = vector.broadcast %70 : vector<1x512xf32> to vector<16x512xf32>
    %84 = arith.addf %82, %83 : vector<16x512xf32>
    %85 = arith.maximumf %81, %84 : vector<16x512xf32>
    %86 = arith.maximumf %78, %85 : vector<16x512xf32>
    %c1_i32_42 = arith.constant 1 : i32
    %87 = tpu.dynamic_rotate %49 by %c1_i32_42 dim 1 : vector<16x512xf32>, i32 -> vector<16x512xf32>
    %88 = vector.broadcast %50 : vector<1x512xf32> to vector<16x512xf32>
    %89 = arith.mulf %87, %88 : vector<16x512xf32>
    %90 = arith.addf %49, %89 : vector<16x512xf32>
    %c511_i32_43 = arith.constant 511 : i32
    %91 = tpu.dynamic_rotate %49 by %c511_i32_43 dim 1 : vector<16x512xf32>, i32 -> vector<16x512xf32>
    %92 = vector.broadcast %51 : vector<1x512xf32> to vector<16x512xf32>
    %93 = arith.mulf %91, %92 : vector<16x512xf32>
    %94 = arith.addf %90, %93 : vector<16x512xf32>
    %c16_i32_44 = arith.constant 16 : i32
    %95 = tpu.dynamic_rotate %94 by %c16_i32_44 dim 1 : vector<16x512xf32>, i32 -> vector<16x512xf32>
    %96 = vector.broadcast %52 : vector<1x512xf32> to vector<16x512xf32>
    %97 = arith.mulf %95, %96 : vector<16x512xf32>
    %98 = arith.addf %94, %97 : vector<16x512xf32>
    %c496_i32_45 = arith.constant 496 : i32
    %99 = tpu.dynamic_rotate %94 by %c496_i32_45 dim 1 : vector<16x512xf32>, i32 -> vector<16x512xf32>
    %100 = vector.broadcast %53 : vector<1x512xf32> to vector<16x512xf32>
    %101 = arith.mulf %99, %100 : vector<16x512xf32>
    %102 = arith.addf %98, %101 : vector<16x512xf32>
    %103 = vector.broadcast %54 : vector<1x512xf32> to vector<16x512xf32>
    %104 = arith.mulf %102, %103 : vector<16x512xf32>
    %105 = arith.addf %86, %104 : vector<16x512xf32>
    %106 = arith.addf %24, %104 : vector<16x512xf32>
    %cst_46 = arith.constant 0.000000e+00 : f32
    %107 = vector.broadcast %cst_46 : f32 to vector<16x512xf32>
    %108 = arith.maximumf %105, %107 : vector<16x512xf32>
    %cst_47 = arith.constant 0.000000e+00 : f32
    %109 = vector.broadcast %cst_47 : f32 to vector<16x512xf32>
    %110 = arith.maximumf %106, %109 : vector<16x512xf32>
    %111 = tpu.concatenate %108, %110 in 0 : vector<16x512xf32>, vector<16x512xf32> -> vector<32x512xf32>
    %c0_48 = arith.constant 0 : index
    %c0_49 = arith.constant 0 : index
    %112 = vector.load %arg5[%c0_48, %c0_49] : memref<16x32xf32, #tpu.memory_space<vmem>>, vector<16x32xf32>
    %cst_50 = arith.constant dense<0.000000e+00> : vector<16x512xf32>
    %113 = tpu.matmul %112, %111, %cst_50 {dimension_numbers = #tpu.dot_dimension_numbers<[1], [0], [0], [1], [0, 0, 1, 1], [], []>} : vector<16x32xf32>, vector<32x512xf32>, vector<16x512xf32> -> vector<16x512xf32>
    %cst_51 = arith.constant dense<0.000000e+00> : vector<16xf32>
    %114 = vector.multi_reduction <add>, %113, %cst_51 [1] : vector<16x512xf32> to vector<16xf32>
    %115 = vector.shape_cast %114 : vector<16xf32> to vector<16x1xf32>
    %cst_52 = arith.constant 0.001953125 : f32
    %116 = vector.broadcast %cst_52 : f32 to vector<16x1xf32>
    %117 = arith.mulf %115, %116 : vector<16x1xf32>
    %118 = vector.broadcast %117 : vector<16x1xf32> to vector<16x512xf32>
    %119 = arith.subf %113, %118 : vector<16x512xf32>
    %120 = arith.mulf %119, %119 : vector<16x512xf32>
    %cst_53 = arith.constant dense<0.000000e+00> : vector<16xf32>
    %121 = vector.multi_reduction <add>, %120, %cst_53 [1] : vector<16x512xf32> to vector<16xf32>
    %122 = vector.shape_cast %121 : vector<16xf32> to vector<16x1xf32>
    %cst_54 = arith.constant 0.001953125 : f32
    %123 = vector.broadcast %cst_54 : f32 to vector<16x1xf32>
    %124 = arith.mulf %122, %123 : vector<16x1xf32>
    %cst_55 = arith.constant 9.99999974E-6 : f32
    %125 = vector.broadcast %cst_55 : f32 to vector<16x1xf32>
    %126 = arith.addf %124, %125 : vector<16x1xf32>
    %127 = math.rsqrt %126 : vector<16x1xf32>
    %128 = vector.broadcast %127 : vector<16x1xf32> to vector<16x512xf32>
    %129 = arith.mulf %119, %128 : vector<16x512xf32>
    %130 = vector.extract_strided_slice %129 {offsets = [0, 0], sizes = [16, 256], strides = [1, 1]} : vector<16x512xf32> to vector<16x256xf32>
    %c0_56 = arith.constant 0 : index
    %c0_57 = arith.constant 0 : index
    %c0_58 = arith.constant 0 : index
    %131 = vector.load %arg6[%c0_56, %c0_57, %c0_58] : memref<2x16x256xf32, #tpu.memory_space<vmem>>, vector<1x16x256xf32>
    %132 = vector.shape_cast %131 : vector<1x16x256xf32> to vector<16x256xf32>
    %133 = vector.shape_cast %130 : vector<16x256xf32> to vector<1x16x256xf32>
    tpu.vector_store %arg6[%c0_56, %c0_57, %c0_58], %133 {strides = array<i32>} : memref<2x16x256xf32, #tpu.memory_space<vmem>>, vector<1x16x256xf32>,
    %134 = vector.extract_strided_slice %129 {offsets = [0, 256], sizes = [16, 256], strides = [1, 1]} : vector<16x512xf32> to vector<16x256xf32>
    %c1_59 = arith.constant 1 : index
    %c0_60 = arith.constant 0 : index
    %c0_61 = arith.constant 0 : index
    %135 = vector.load %arg6[%c1_59, %c0_60, %c0_61] : memref<2x16x256xf32, #tpu.memory_space<vmem>>, vector<1x16x256xf32>
    %136 = vector.shape_cast %135 : vector<1x16x256xf32> to vector<16x256xf32>
    %137 = vector.shape_cast %134 : vector<16x256xf32> to vector<1x16x256xf32>
    tpu.vector_store %arg6[%c1_59, %c0_60, %c0_61], %137 {strides = array<i32>} : memref<2x16x256xf32, #tpu.memory_space<vmem>>, vector<1x16x256xf32>,
    return
  }
}

</mosaic_0001>

<llo_original>
// kernel: _lambda_.1
$region0: #{_lambda_.1}
  #allocation0 [shape = 'u32[]', space=smem, size = 0x4, offset = 0x4, fixed_abs, tag = 'smem constant byte address 0x4 - core index']
  #allocation1 [shape = 'u32[144,128]{1,0:T(1,128)}', space=vmem, size = 0x12000, scoped, tag = 'internal scratch']
  %s0 = inlined_call_operand.vmem [shape: f32[2,8,256], index: 0, kind: input, shape index: {}]
  %s1 = inlined_call_operand.vmem [shape: f32[2,12,256], index: 1, kind: input, shape index: {}]
  %s2 = inlined_call_operand.vmem [shape: f32[8,512], index: 2, kind: input, shape index: {}]
  %s3 = inlined_call_operand.vmem [shape: f32[16,8], index: 3, kind: input, shape index: {}]
  %s4 = inlined_call_operand.vmem [shape: f32[16,12], index: 4, kind: input, shape index: {}]
  %s5 = inlined_call_operand.vmem [shape: f32[16,32], index: 5, kind: input, shape index: {}]
  %s6 = inlined_call_operand.vmem [shape: f32[2,16,256], index: 6, kind: output, shape index: {}]
  %s7 = sld [smem:[#allocation0]]
  $region34: #{_lambda_.1} parent=0
    _
  %s9 = ssub.s32 1, %s7
  %s10 = scalar_select 0, %s9, %s7
  // Predicated region
  $region2: #{_lambda_.1} parent=0 // pred_check
    _
  $region3: #{_lambda_.1} parent=0 // pred_check_branch
    %12 = sbr.rel (0) target = $region5
  $region4: #{_lambda_.1} parent=0 // pred_region
    _
  $region5: #{_lambda_.1} parent=0 // pred_fallthru
    _
  // Predicated region
  $region6: #{_lambda_.1} parent=0 // pred_check
    _
  $region7: #{_lambda_.1} parent=0 // pred_check_branch
    %14 = sbr.rel (0) target = $region9
  $region8: #{_lambda_.1} parent=0 // pred_region
    _
  $region9: #{_lambda_.1} parent=0 // pred_fallthru
    _
  // Predicated region
  $region10: #{_lambda_.1} parent=0 // pred_check
    _
  $region11: #{_lambda_.1} parent=0 // pred_check_branch
    %16 = sbr.rel (0) target = $region13
  $region12: #{_lambda_.1} parent=0 // pred_region
    _
  $region13: #{_lambda_.1} parent=0 // pred_fallthru
    _
  // Predicated region
  $region14: #{_lambda_.1} parent=0 // pred_check
    _
  $region15: #{_lambda_.1} parent=0 // pred_check_branch
    %18 = sbr.rel (0) target = $region17
  $region16: #{_lambda_.1} parent=0 // pred_region
    _
  $region17: #{_lambda_.1} parent=0 // pred_fallthru
    _
  // Predicated region
  $region18: #{_lambda_.1} parent=0 // pred_check
    _
  $region19: #{_lambda_.1} parent=0 // pred_check_branch
    %20 = sbr.rel (0) target = $region21
  $region20: #{_lambda_.1} parent=0 // pred_region
    _
  $region21: #{_lambda_.1} parent=0 // pred_fallthru
    _
  // Predicated region
  $region22: #{_lambda_.1} parent=0 // pred_check
    _
  $region23: #{_lambda_.1} parent=0 // pred_check_branch
    %22 = sbr.rel (0) target = $region25
  $region24: #{_lambda_.1} parent=0 // pred_region
    _
  $region25: #{_lambda_.1} parent=0 // pred_fallthru
    _
  %v23 = vld [vmem:[%s3] sm:$0xff]
  %v24 = vld [vmem:[%s3 + $0x8] sm:$0xff]
  %v25 = vld [vmem:[%s0] sm:$0xff]
  %v26 = vld [vmem:[%s0 + $0x8] sm:$0xff]
  %s27 = scalar_lea.vmem %s0, 16
  %v28 = vld [vmem:[%s27] sm:$0xff]
  %v29 = vld [vmem:[%s27 + $0x8] sm:$0xff]
  %v30 = vmax.f32 %v25, 0.0
  %v31 = vmax.f32 %v26, 0.0
  %v32 = vmax.f32 %v28, 0.0
  %v33 = vmax.f32 %v29, 0.0
  %vm34 = vcmask 64512
  %v36 = vsel %vm34, %v23, 0
  %v39 = vsel %vm34, %v24, 0
  %41 = vmatprep.subr.mxu0 0.0
  %42 = vmatpush1.msra.mxu0 0.0
  %43 = vmatprep.subr.mxu0 0.0
  %44 = vmatpush1.msra.mxu0 0.0
  %45 = vmatprep.subr.mxu0 0.0
  %46 = vmatpush1.msra.mxu0 0.0
  %47 = vmatprep.subr.mxu0 0.0
  %48 = vmatpush1.msra.mxu0 0.0
  %49 = vmatprep.subr.mxu0 0.0
  %50 = vmatpush1.msra.mxu0 0.0
  %51 = vmatprep.subr.mxu0 0.0
  %52 = vmatpush1.msra.mxu0 0.0
  %53 = vmatprep.subr.mxu0 0.0
  %54 = vmatpush1.msra.mxu0 0.0
  %55 = vmatprep.subr.mxu0 0.0
  %56 = vmatpush1.msra.mxu0 0.0
  %57 = vmatprep.subr.mxu0 0.0
  %58 = vmatpush1.msra.mxu0 0.0
  %59 = vmatprep.subr.mxu0 0.0
  %60 = vmatpush1.msra.mxu0 0.0
  %61 = vmatprep.subr.mxu0 0.0
  %62 = vmatpush1.msra.mxu0 0.0
  %63 = vmatprep.subr.mxu0 0.0
  %64 = vmatpush1.msra.mxu0 0.0
  %65 = vmatprep.subr.mxu0 0.0
  %66 = vmatpush1.msra.mxu0 0.0
  %67 = vmatprep.subr.mxu0 0.0
  %68 = vmatpush1.msra.mxu0 0.0
  %69 = vmatprep.subr.mxu0 0.0
  %70 = vmatpush1.msra.mxu0 0.0
  %71 = vmatprep.subr.mxu0 %v31
  %72 = vmatpush1.msra.mxu0 %v30
  %73 = vmatprep.subr.mxu0 0.0
  %74 = vmatpush2.msra.mxu0 0.0
  %75 = vmatprep.subr.mxu0 0.0
  %76 = vmatpush2.msra.mxu0 0.0
  %77 = vmatprep.subr.mxu0 0.0
  %78 = vmatpush2.msra.mxu0 0.0
  %79 = vmatprep.subr.mxu0 0.0
  %80 = vmatpush2.msra.mxu0 0.0
  %81 = vmatprep.subr.mxu0 0.0
  %82 = vmatpush2.msra.mxu0 0.0
  %83 = vmatprep.subr.mxu0 0.0
  %84 = vmatpush2.msra.mxu0 0.0
  %85 = vmatprep.subr.mxu0 0.0
  %86 = vmatpush2.msra.mxu0 0.0
  %87 = vmatprep.subr.mxu0 0.0
  %88 = vmatpush2.msra.mxu0 0.0
  %89 = vmatprep.subr.mxu0 0.0
  %90 = vmatpush2.msra.mxu0 0.0
  %91 = vmatprep.subr.mxu0 0.0
  %92 = vmatpush2.msra.mxu0 0.0
  %93 = vmatprep.subr.mxu0 0.0
  %94 = vmatpush2.msra.mxu0 0.0
  %95 = vmatprep.subr.mxu0 0.0
  %96 = vmatpush2.msra.mxu0 0.0
  %97 = vmatprep.subr.mxu0 0.0
  %98 = vmatpush2.msra.mxu0 0.0
  %99 = vmatprep.subr.mxu0 0.0
  %100 = vmatpush2.msra.mxu0 0.0
  %101 = vmatprep.subr.mxu0 0.0
  %102 = vmatpush2.msra.mxu0 0.0
  %103 = vmatprep.subr.mxu0 0.0
  %104 = vmatpush2.msra.mxu0 0.0
  %105 = vmatprep.mubr.f32.mxu0 0.0
  %106 = vmatmul.mubr.f32.gmra.mxu0 %v36
  %v107 = vpop.f32.mrf.mxu0
  %v108 = vadd.f32 0.0, %v107
  %v109 = vpop.f32.mrf.mxu0
  %v110 = vadd.f32 0.0, %v109
  %111 = vmatprep.mubr.f32.mxu0 0.0
  %112 = vmatmul.mubr.f32.gmra.mxu0 %v39
  %v113 = vpop.f32.mrf.mxu0
  %v114 = vadd.f32 0.0, %v113
  %v115 = vpop.f32.mrf.mxu0
  %v116 = vadd.f32 0.0, %v115
  %117 = vdwg.mxu0
  %118 = vmatprep.subr.mxu0 0.0
  %119 = vmatpush1.msra.mxu0 0.0
  %120 = vmatprep.subr.mxu0 0.0
  %121 = vmatpush1.msra.mxu0 0.0
  %122 = vmatprep.subr.mxu0 0.0
  %123 = vmatpush1.msra.mxu0 0.0
  %124 = vmatprep.subr.mxu0 0.0
  %125 = vmatpush1.msra.mxu0 0.0
  %126 = vmatprep.subr.mxu0 0.0
  %127 = vmatpush1.msra.mxu0 0.0
  %128 = vmatprep.subr.mxu0 0.0
  %129 = vmatpush1.msra.mxu0 0.0
  %130 = vmatprep.subr.mxu0 0.0
  %131 = vmatpush1.msra.mxu0 0.0
  %132 = vmatprep.subr.mxu0 0.0
  %133 = vmatpush1.msra.mxu0 0.0
  %134 = vmatprep.subr.mxu0 0.0
  %135 = vmatpush1.msra.mxu0 0.0
  %136 = vmatprep.subr.mxu0 0.0
  %137 = vmatpush1.msra.mxu0 0.0
  %138 = vmatprep.subr.mxu0 0.0
  %139 = vmatpush1.msra.mxu0 0.0
  %140 = vmatprep.subr.mxu0 0.0
  %141 = vmatpush1.msra.mxu0 0.0
  %142 = vmatprep.subr.mxu0 0.0
  %143 = vmatpush1.msra.mxu0 0.0
  %144 = vmatprep.subr.mxu0 0.0
  %145 = vmatpush1.msra.mxu0 0.0
  %146 = vmatprep.subr.mxu0 0.0
  %147 = vmatpush1.msra.mxu0 0.0
  %148 = vmatprep.subr.mxu0 %v33
  %149 = vmatpush1.msra.mxu0 %v32
  %150 = vmatprep.subr.mxu0 0.0
  %151 = vmatpush2.msra.mxu0 0.0
  %152 = vmatprep.subr.mxu0 0.0
  %153 = vmatpush2.msra.mxu0 0.0
  %154 = vmatprep.subr.mxu0 0.0
  %155 = vmatpush2.msra.mxu0 0.0
  %156 = vmatprep.subr.mxu0 0.0
  %157 = vmatpush2.msra.mxu0 0.0
  %158 = vmatprep.subr.mxu0 0.0
  %159 = vmatpush2.msra.mxu0 0.0
  %160 = vmatprep.subr.mxu0 0.0
  %161 = vmatpush2.msra.mxu0 0.0
  %162 = vmatprep.subr.mxu0 0.0
  %163 = vmatpush2.msra.mxu0 0.0
  %164 = vmatprep.subr.mxu0 0.0
  %165 = vmatpush2.msra.mxu0 0.0
  %166 = vmatprep.subr.mxu0 0.0
  %167 = vmatpush2.msra.mxu0 0.0
  %168 = vmatprep.subr.mxu0 0.0
  %169 = vmatpush2.msra.mxu0 0.0
  %170 = vmatprep.subr.mxu0 0.0
  %171 = vmatpush2.msra.mxu0 0.0
  %172 = vmatprep.subr.mxu0 0.0
  %173 = vmatpush2.msra.mxu0 0.0
  %174 = vmatprep.subr.mxu0 0.0
  %175 = vmatpush2.msra.mxu0 0.0
  %176 = vmatprep.subr.mxu0 0.0
  %177 = vmatpush2.msra.mxu0 0.0
  %178 = vmatprep.subr.mxu0 0.0
  %179 = vmatpush2.msra.mxu0 0.0
  %180 = vmatprep.subr.mxu0 0.0
  %181 = vmatpush2.msra.mxu0 0.0
  %182 = vmatprep.mubr.f32.mxu0 0.0
  %183 = vmatmul.mubr.f32.gmra.mxu0 %v36
  %v184 = vpop.f32.mrf.mxu0
  %v185 = vadd.f32 0.0, %v184
  %v186 = vpop.f32.mrf.mxu0
  %v187 = vadd.f32 0.0, %v186
  %188 = vmatprep.mubr.f32.mxu0 0.0
  %189 = vmatmul.mubr.f32.gmra.mxu0 %v39
  %v190 = vpop.f32.mrf.mxu0
  %v191 = vadd.f32 0.0, %v190
  %v192 = vpop.f32.mrf.mxu0
  %v193 = vadd.f32 0.0, %v192
  %194 = vdwg.mxu0
  %v195 = vadd.f32 %v108, %v110
  %v196 = vadd.f32 %v195, %v185
  %v197 = vadd.f32 %v196, %v187
  %198 = vadd.xlane.f32.xlu0 %v197
  %v199 = vpop.xlane.xlu0 %198
  %v200 = vadd.f32 %v114, %v116
  %v201 = vadd.f32 %v200, %v191
  %v202 = vadd.f32 %v201, %v193
  %203 = vadd.xlane.f32.xlu0 %v202
  %v204 = vpop.xlane.xlu0 %203
  %v205 = vmul.f32 %v199, 0.001953125
  %v206 = vmul.f32 %v204, 0.001953125
  %v207 = vsub.f32 %v108, %v205
  %v208 = vsub.f32 %v110, %v205
  %v209 = vsub.f32 %v185, %v205
  %v210 = vsub.f32 %v187, %v205
  %v211 = vsub.f32 %v114, %v206
  %v212 = vsub.f32 %v116, %v206
  %v213 = vsub.f32 %v191, %v206
  %v214 = vsub.f32 %v193, %v206
  %v215 = vmul.f32 %v207, %v207
  %v216 = vmul.f32 %v208, %v208
  %v217 = vmul.f32 %v209, %v209
  %v218 = vmul.f32 %v210, %v210
  %v219 = vmul.f32 %v211, %v211
  %v220 = vmul.f32 %v212, %v212
  %v221 = vmul.f32 %v213, %v213
  %v222 = vmul.f32 %v214, %v214
  %v223 = vadd.f32 %v215, %v216
  %v224 = vadd.f32 %v223, %v217
  %v225 = vadd.f32 %v224, %v218
  %226 = vadd.xlane.f32.xlu0 %v225
  %v227 = vpop.xlane.xlu0 %226
  %v228 = vadd.f32 %v219, %v220
  %v229 = vadd.f32 %v228, %v221
  %v230 = vadd.f32 %v229, %v222
  %231 = vadd.xlane.f32.xlu0 %v230
  %v232 = vpop.xlane.xlu0 %231
  %v233 = vmul.f32 %v227, 0.001953125
  %v234 = vmul.f32 %v232, 0.001953125
  %v235 = vadd.f32 %v233, 1e-05
  %v236 = vadd.f32 %v234, 1e-05
  %v237 = vrsqrt.pop %v235
  %v238 = vrsqrt.pop %v236
  %v239 = vmul.f32 %v207, %v237
  %v240 = vmul.f32 %v208, %v237
  %v241 = vmul.f32 %v209, %v237
  %v242 = vmul.f32 %v210, %v237
  %v243 = vmul.f32 %v211, %v238
  %v244 = vmul.f32 %v212, %v238
  %v245 = vmul.f32 %v213, %v238
  %v246 = vmul.f32 %v214, %v238
  %v247 = vld [vmem:[%s4] sm:$0xff]
  %v248 = vld [vmem:[%s4 + $0x8] sm:$0xff]
  %v249 = vld [vmem:[%s1] sm:$0xff]
  %v250 = vld [vmem:[%s1 + $0x8] sm:$0xff]
  %v251 = vld [vmem:[%s1 + $0x10] sm:$0xf]
  %v252 = vld [vmem:[%s1 + $0x18] sm:$0xf]
  %s253 = scalar_lea.vmem %s1, 32
  %v254 = vld [vmem:[%s253] sm:$0xff]
  %v255 = vld [vmem:[%s253 + $0x8] sm:$0xff]
  %v256 = vld [vmem:[%s253 + $0x10] sm:$0xf]
  %v257 = vld [vmem:[%s253 + $0x18] sm:$0xf]
  %v258 = vmax.f32 %v249, 0.0
  %v259 = vmax.f32 %v250, 0.0
  %v260 = vmax.f32 %v254, 0.0
  %v261 = vmax.f32 %v255, 0.0
  %v262 = vmax.f32 %v251, 0.0
  %v263 = vmax.f32 %v252, 0.0
  %v264 = vmax.f32 %v256, 0.0
  %v265 = vmax.f32 %v257, 0.0
  %vm266 = vcmask 97280
  %v268 = vsel %vm266, %v247, 0
  %v271 = vsel %vm266, %v248, 0
  %vm273 = vcmask 1043456
  %v275 = vsel %vm273, %v262, 0
  %v278 = vsel %vm273, %v263, 0
  %v281 = vsel %vm273, %v264, 0
  %v284 = vsel %vm273, %v265, 0
  %286 = vmatprep.subr.mxu0 0.0
  %287 = vmatpush1.msra.mxu0 0.0
  %288 = vmatprep.subr.mxu0 0.0
  %289 = vmatpush1.msra.mxu0 0.0
  %290 = vmatprep.subr.mxu0 0.0
  %291 = vmatpush1.msra.mxu0 0.0
  %292 = vmatprep.subr.mxu0 0.0
  %293 = vmatpush1.msra.mxu0 0.0
  %294 = vmatprep.subr.mxu0 0.0
  %295 = vmatpush1.msra.mxu0 0.0
  %296 = vmatprep.subr.mxu0 0.0
  %297 = vmatpush1.msra.mxu0 0.0
  %298 = vmatprep.subr.mxu0 0.0
  %299 = vmatpush1.msra.mxu0 0.0
  %300 = vmatprep.subr.mxu0 0.0
  %301 = vmatpush1.msra.mxu0 0.0
  %302 = vmatprep.subr.mxu0 0.0
  %303 = vmatpush1.msra.mxu0 0.0
  %304 = vmatprep.subr.mxu0 0.0
  %305 = vmatpush1.msra.mxu0 0.0
  %306 = vmatprep.subr.mxu0 0.0
  %307 = vmatpush1.msra.mxu0 0.0
  %308 = vmatprep.subr.mxu0 0.0
  %309 = vmatpush1.msra.mxu0 0.0
  %310 = vmatprep.subr.mxu0 0.0
  %311 = vmatpush1.msra.mxu0 0.0
  %312 = vmatprep.subr.mxu0 0.0
  %313 = vmatpush1.msra.mxu0 0.0
  %314 = vmatprep.subr.mxu0 %v278
  %315 = vmatpush1.msra.mxu0 %v275
  %316 = vmatprep.subr.mxu0 %v259
  %317 = vmatpush1.msra.mxu0 %v258
  %318 = vmatprep.subr.mxu0 0.0
  %319 = vmatpush2.msra.mxu0 0.0
  %320 = vmatprep.subr.mxu0 0.0
  %321 = vmatpush2.msra.mxu0 0.0
  %322 = vmatprep.subr.mxu0 0.0
  %323 = vmatpush2.msra.mxu0 0.0
  %324 = vmatprep.subr.mxu0 0.0
  %325 = vmatpush2.msra.mxu0 0.0
  %326 = vmatprep.subr.mxu0 0.0
  %327 = vmatpush2.msra.mxu0 0.0
  %328 = vmatprep.subr.mxu0 0.0
  %329 = vmatpush2.msra.mxu0 0.0
  %330 = vmatprep.subr.mxu0 0.0
  %331 = vmatpush2.msra.mxu0 0.0
  %332 = vmatprep.subr.mxu0 0.0
  %333 = vmatpush2.msra.mxu0 0.0
  %334 = vmatprep.subr.mxu0 0.0
  %335 = vmatpush2.msra.mxu0 0.0
  %336 = vmatprep.subr.mxu0 0.0
  %337 = vmatpush2.msra.mxu0 0.0
  %338 = vmatprep.subr.mxu0 0.0
  %339 = vmatpush2.msra.mxu0 0.0
  %340 = vmatprep.subr.mxu0 0.0
  %341 = vmatpush2.msra.mxu0 0.0
  %342 = vmatprep.subr.mxu0 0.0
  %343 = vmatpush2.msra.mxu0 0.0
  %344 = vmatprep.subr.mxu0 0.0
  %345 = vmatpush2.msra.mxu0 0.0
  %346 = vmatprep.subr.mxu0 0.0
  %347 = vmatpush2.msra.mxu0 0.0
  %348 = vmatprep.subr.mxu0 0.0
  %349 = vmatpush2.msra.mxu0 0.0
  %350 = vmatprep.mubr.f32.mxu0 0.0
  %351 = vmatmul.mubr.f32.gmra.mxu0 %v268
  %v352 = vpop.f32.mrf.mxu0
  %v353 = vadd.f32 0.0, %v352
  %v354 = vpop.f32.mrf.mxu0
  %v355 = vadd.f32 0.0, %v354
  %356 = vmatprep.mubr.f32.mxu0 0.0
  %357 = vmatmul.mubr.f32.gmra.mxu0 %v271
  %v358 = vpop.f32.mrf.mxu0
  %v359 = vadd.f32 0.0, %v358
  %v360 = vpop.f32.mrf.mxu0
  %v361 = vadd.f32 0.0, %v360
  %362 = vdwg.mxu0
  %363 = vmatprep.subr.mxu0 0.0
  %364 = vmatpush1.msra.mxu0 0.0
  %365 = vmatprep.subr.mxu0 0.0
  %366 = vmatpush1.msra.mxu0 0.0
  %367 = vmatprep.subr.mxu0 0.0
  %368 = vmatpush1.msra.mxu0 0.0
  %369 = vmatprep.subr.mxu0 0.0
  %370 = vmatpush1.msra.mxu0 0.0
  %371 = vmatprep.subr.mxu0 0.0
  %372 = vmatpush1.msra.mxu0 0.0
  %373 = vmatprep.subr.mxu0 0.0
  %374 = vmatpush1.msra.mxu0 0.0
  %375 = vmatprep.subr.mxu0 0.0
  %376 = vmatpush1.msra.mxu0 0.0
  %377 = vmatprep.subr.mxu0 0.0
  %378 = vmatpush1.msra.mxu0 0.0
  %379 = vmatprep.subr.mxu0 0.0
  %380 = vmatpush1.msra.mxu0 0.0
  %381 = vmatprep.subr.mxu0 0.0
  %382 = vmatpush1.msra.mxu0 0.0
  %383 = vmatprep.subr.mxu0 0.0
  %384 = vmatpush1.msra.mxu0 0.0
  %385 = vmatprep.subr.mxu0 0.0
  %386 = vmatpush1.msra.mxu0 0.0
  %387 = vmatprep.subr.mxu0 0.0
  %388 = vmatpush1.msra.mxu0 0.0
  %389 = vmatprep.subr.mxu0 0.0
  %390 = vmatpush1.msra.mxu0 0.0
  %391 = vmatprep.subr.mxu0 %v284
  %392 = vmatpush1.msra.mxu0 %v281
  %393 = vmatprep.subr.mxu0 %v261
  %394 = vmatpush1.msra.mxu0 %v260
  %395 = vmatprep.subr.mxu0 0.0
  %396 = vmatpush2.msra.mxu0 0.0
  %397 = vmatprep.subr.mxu0 0.0
  %398 = vmatpush2.msra.mxu0 0.0
  %399 = vmatprep.subr.mxu0 0.0
  %400 = vmatpush2.msra.mxu0 0.0
  %401 = vmatprep.subr.mxu0 0.0
  %402 = vmatpush2.msra.mxu0 0.0
  %403 = vmatprep.subr.mxu0 0.0
  %404 = vmatpush2.msra.mxu0 0.0
  %405 = vmatprep.subr.mxu0 0.0
  %406 = vmatpush2.msra.mxu0 0.0
  %407 = vmatprep.subr.mxu0 0.0
  %408 = vmatpush2.msra.mxu0 0.0
  %409 = vmatprep.subr.mxu0 0.0
  %410 = vmatpush2.msra.mxu0 0.0
  %411 = vmatprep.subr.mxu0 0.0
  %412 = vmatpush2.msra.mxu0 0.0
  %413 = vmatprep.subr.mxu0 0.0
  %414 = vmatpush2.msra.mxu0 0.0
  %415 = vmatprep.subr.mxu0 0.0
  %416 = vmatpush2.msra.mxu0 0.0
  %417 = vmatprep.subr.mxu0 0.0
  %418 = vmatpush2.msra.mxu0 0.0
  %419 = vmatprep.subr.mxu0 0.0
  %420 = vmatpush2.msra.mxu0 0.0
  %421 = vmatprep.subr.mxu0 0.0
  %422 = vmatpush2.msra.mxu0 0.0
  %423 = vmatprep.subr.mxu0 0.0
  %424 = vmatpush2.msra.mxu0 0.0
  %425 = vmatprep.subr.mxu0 0.0
  %426 = vmatpush2.msra.mxu0 0.0
  %427 = vmatprep.mubr.f32.mxu0 0.0
  %428 = vmatmul.mubr.f32.gmra.mxu0 %v268
  %v429 = vpop.f32.mrf.mxu0
  %v430 = vadd.f32 0.0, %v429
  %v431 = vpop.f32.mrf.mxu0
  %v432 = vadd.f32 0.0, %v431
  %433 = vmatprep.mubr.f32.mxu0 0.0
  %434 = vmatmul.mubr.f32.gmra.mxu0 %v271
  %v435 = vpop.f32.mrf.mxu0
  %v436 = vadd.f32 0.0, %v435
  %v437 = vpop.f32.mrf.mxu0
  %v438 = vadd.f32 0.0, %v437
  %439 = vdwg.mxu0
  %v440 = vadd.f32 %v353, %v355
  %v441 = vadd.f32 %v440, %v430
  %v442 = vadd.f32 %v441, %v432
  %443 = vadd.xlane.f32.xlu0 %v442
  %v444 = vpop.xlane.xlu0 %443
  %v445 = vadd.f32 %v359, %v361
  %v446 = vadd.f32 %v445, %v436
  %v447 = vadd.f32 %v446, %v438
  %448 = vadd.xlane.f32.xlu0 %v447
  %v449 = vpop.xlane.xlu0 %448
  %v450 = vmul.f32 %v444, 0.001953125
  %v451 = vmul.f32 %v449, 0.001953125
  %v452 = vsub.f32 %v353, %v450
  %v453 = vsub.f32 %v355, %v450
  %v454 = vsub.f32 %v430, %v450
  %v455 = vsub.f32 %v432, %v450
  %v456 = vsub.f32 %v359, %v451
  %v457 = vsub.f32 %v361, %v451
  %v458 = vsub.f32 %v436, %v451
  %v459 = vsub.f32 %v438, %v451
  %v460 = vmul.f32 %v452, %v452
  %v461 = vmul.f32 %v453, %v453
  %v462 = vmul.f32 %v454, %v454
  %v463 = vmul.f32 %v455, %v455
  %v464 = vmul.f32 %v456, %v456
  %v465 = vmul.f32 %v457, %v457
  %v466 = vmul.f32 %v458, %v458
  %v467 = vmul.f32 %v459, %v459
  %v468 = vadd.f32 %v460, %v461
  %v469 = vadd.f32 %v468, %v462
  %v470 = vadd.f32 %v469, %v463
  %471 = vadd.xlane.f32.xlu0 %v470
  %v472 = vpop.xlane.xlu0 %471
  %v473 = vadd.f32 %v464, %v465
  %v474 = vadd.f32 %v473, %v466
  %v475 = vadd.f32 %v474, %v467
  %476 = vadd.xlane.f32.xlu0 %v475
  %v477 = vpop.xlane.xlu0 %476
  %v478 = vmul.f32 %v472, 0.001953125
  %v479 = vmul.f32 %v477, 0.001953125
  %v480 = vadd.f32 %v478, 1e-05
  %v481 = vadd.f32 %v479, 1e-05
  %v482 = vrsqrt.pop %v480
  %v483 = vrsqrt.pop %v481
  %v484 = vmul.f32 %v452, %v482
  %v485 = vmul.f32 %v453, %v482
  %v486 = vmul.f32 %v454, %v482
  %v487 = vmul.f32 %v455, %v482
  %v488 = vmul.f32 %v456, %v483
  %v489 = vmul.f32 %v457, %v483
  %v490 = vmul.f32 %v458, %v483
  %v491 = vmul.f32 %v459, %v483
  %v492 = vld [vmem:[%s2] ss:$8 sm:$0xf]
  %s493 = scalar_lea.vmem %s2, 1
  %v494 = vld [vmem:[%s493] ss:$8 sm:$0xf]
  %s495 = scalar_lea.vmem %s2, 2
  %v496 = vld [vmem:[%s495] ss:$8 sm:$0xf]
  %s497 = scalar_lea.vmem %s2, 3
  %v498 = vld [vmem:[%s497] ss:$8 sm:$0xf]
  %s499 = scalar_lea.vmem %s2, 4
  %v500 = vld [vmem:[%s499] ss:$8 sm:$0xf]
  %v501 = vsub.f32 %v492, 1.0
  %v502 = vmul.f32 %v501, 1e+30
  %v503 = vsub.f32 %v494, 1.0
  %v504 = vmul.f32 %v503, 1e+30
  %v505 = vsub.f32 %v496, 1.0
  %v506 = vmul.f32 %v505, 1e+30
  %v507 = vsub.f32 %v498, 1.0
  %v508 = vmul.f32 %v507, 1e+30
  %509 = vrot.lane.b32.xlu0 %v239, 1
  %v510 = vpop.permute.xlu0 %509
  %511 = vrot.lane.b32.xlu0 %v243, 1
  %v512 = vpop.permute.xlu0 %511
  %513 = vrot.lane.b32.xlu0 %v240, 1
  %v514 = vpop.permute.xlu0 %513
  %515 = vrot.lane.b32.xlu0 %v244, 1
  %v516 = vpop.permute.xlu0 %515
  %517 = vrot.lane.b32.xlu0 %v241, 1
  %v518 = vpop.permute.xlu0 %517
  %519 = vrot.lane.b32.xlu0 %v245, 1
  %v520 = vpop.permute.xlu0 %519
  %521 = vrot.lane.b32.xlu0 %v242, 1
  %v522 = vpop.permute.xlu0 %521
  %523 = vrot.lane.b32.xlu0 %v246, 1
  %v524 = vpop.permute.xlu0 %523
  %v525 = vlaneseq
  %v526 = vand.u32 %v525, 127
  %vm527 = vcmp.lt.s32.totalorder %v526, 1
  %v528 = vsel %vm527, %v518, %v522
  %v529 = vsel %vm527, %v520, %v524
  %v530 = vsel %vm527, %v514, %v518
  %v531 = vsel %vm527, %v516, %v520
  %v532 = vsel %vm527, %v510, %v514
  %v533 = vsel %vm527, %v512, %v516
  %v534 = vsel %vm527, %v522, %v510
  %v535 = vsel %vm527, %v524, %v512
  %v537 = vlaneseq
  %v538 = vshrl.u32 %v537, 7
  %v539 = vsub.s32 0, %v538
  %v540 = vrot.slane %v502, %v539
  %v541 = vlaneseq
  %v542 = vshrl.u32 %v541, 7
  %v543 = vsub.s32 1, %v542
  %v544 = vrot.slane %v502, %v543
  %v545 = vlaneseq
  %v546 = vshrl.u32 %v545, 7
  %v547 = vsub.s32 2, %v546
  %v548 = vrot.slane %v502, %v547
  %v549 = vlaneseq
  %v550 = vshrl.u32 %v549, 7
  %v551 = vsub.s32 3, %v550
  %v552 = vrot.slane %v502, %v551
  %v557 = vadd.f32 %v534, %v540
  %v558 = vadd.f32 %v532, %v544
  %v559 = vadd.f32 %v530, %v548
  %v560 = vadd.f32 %v528, %v552
  %v561 = vadd.f32 %v535, %v540
  %v562 = vadd.f32 %v533, %v544
  %v563 = vadd.f32 %v531, %v548
  %v564 = vadd.f32 %v529, %v552
  %565 = vrot.lane.b32.xlu0 %v239, 127
  %v566 = vpop.permute.xlu0 %565
  %567 = vrot.lane.b32.xlu0 %v243, 127
  %v568 = vpop.permute.xlu0 %567
  %569 = vrot.lane.b32.xlu0 %v240, 127
  %v570 = vpop.permute.xlu0 %569
  %571 = vrot.lane.b32.xlu0 %v244, 127
  %v572 = vpop.permute.xlu0 %571
  %573 = vrot.lane.b32.xlu0 %v241, 127
  %v574 = vpop.permute.xlu0 %573
  %575 = vrot.lane.b32.xlu0 %v245, 127
  %v576 = vpop.permute.xlu0 %575
  %577 = vrot.lane.b32.xlu0 %v242, 127
  %v578 = vpop.permute.xlu0 %577
  %579 = vrot.lane.b32.xlu0 %v246, 127
  %v580 = vpop.permute.xlu0 %579
  %vm581 = vcmp.lt.s32.totalorder %v526, 127
  %v582 = vsel %vm581, %v574, %v578
  %v583 = vsel %vm581, %v576, %v580
  %v584 = vsel %vm581, %v570, %v574
  %v585 = vsel %vm581, %v572, %v576
  %v586 = vsel %vm581, %v566, %v570
  %v587 = vsel %vm581, %v568, %v572
  %v588 = vsel %vm581, %v578, %v566
  %v589 = vsel %vm581, %v580, %v568
  %v591 = vlaneseq
  %v592 = vshrl.u32 %v591, 7
  %v593 = vsub.s32 0, %v592
  %v594 = vrot.slane %v504, %v593
  %v595 = vlaneseq
  %v596 = vshrl.u32 %v595, 7
  %v597 = vsub.s32 1, %v596
  %v598 = vrot.slane %v504, %v597
  %v599 = vlaneseq
  %v600 = vshrl.u32 %v599, 7
  %v601 = vsub.s32 2, %v600
  %v602 = vrot.slane %v504, %v601
  %v603 = vlaneseq
  %v604 = vshrl.u32 %v603, 7
  %v605 = vsub.s32 3, %v604
  %v606 = vrot.slane %v504, %v605
  %v611 = vadd.f32 %v586, %v594
  %v612 = vadd.f32 %v584, %v598
  %v613 = vadd.f32 %v582, %v602
  %v614 = vadd.f32 %v588, %v606
  %v615 = vadd.f32 %v587, %v594
  %v616 = vadd.f32 %v585, %v598
  %v617 = vadd.f32 %v583, %v602
  %v618 = vadd.f32 %v589, %v606
  %v619 = vmax.f32 %v557, %v611
  %v620 = vmax.f32 %v558, %v612
  %v621 = vmax.f32 %v559, %v613
  %v622 = vmax.f32 %v560, %v614
  %v623 = vmax.f32 %v561, %v615
  %v624 = vmax.f32 %v562, %v616
  %v625 = vmax.f32 %v563, %v617
  %v626 = vmax.f32 %v564, %v618
  %v627 = vmax.f32 %v239, %v619
  %v628 = vmax.f32 %v240, %v620
  %v629 = vmax.f32 %v241, %v621
  %v630 = vmax.f32 %v242, %v622
  %v631 = vmax.f32 %v243, %v623
  %v632 = vmax.f32 %v244, %v624
  %v633 = vmax.f32 %v245, %v625
  %v634 = vmax.f32 %v246, %v626
  %635 = vrot.lane.b32.xlu0 %v627, 16
  %v636 = vpop.permute.xlu0 %635
  %637 = vrot.lane.b32.xlu0 %v631, 16
  %v638 = vpop.permute.xlu0 %637
  %639 = vrot.lane.b32.xlu0 %v628, 16
  %v640 = vpop.permute.xlu0 %639
  %641 = vrot.lane.b32.xlu0 %v632, 16
  %v642 = vpop.permute.xlu0 %641
  %643 = vrot.lane.b32.xlu0 %v629, 16
  %v644 = vpop.permute.xlu0 %643
  %645 = vrot.lane.b32.xlu0 %v633, 16
  %v646 = vpop.permute.xlu0 %645
  %647 = vrot.lane.b32.xlu0 %v630, 16
  %v648 = vpop.permute.xlu0 %647
  %649 = vrot.lane.b32.xlu0 %v634, 16
  %v650 = vpop.permute.xlu0 %649
  %vm651 = vcmp.lt.s32.totalorder %v526, 16
  %v652 = vsel %vm651, %v644, %v648
  %v653 = vsel %vm651, %v646, %v650
  %v654 = vsel %vm651, %v640, %v644
  %v655 = vsel %vm651, %v642, %v646
  %v656 = vsel %vm651, %v636, %v640
  %v657 = vsel %vm651, %v638, %v642
  %v658 = vsel %vm651, %v648, %v636
  %v659 = vsel %vm651, %v650, %v638
  %v661 = vlaneseq
  %v662 = vshrl.u32 %v661, 7
  %v663 = vsub.s32 0, %v662
  %v664 = vrot.slane %v506, %v663
  %v665 = vlaneseq
  %v666 = vshrl.u32 %v665, 7
  %v667 = vsub.s32 1, %v666
  %v668 = vrot.slane %v506, %v667
  %v669 = vlaneseq
  %v670 = vshrl.u32 %v669, 7
  %v671 = vsub.s32 2, %v670
  %v672 = vrot.slane %v506, %v671
  %v673 = vlaneseq
  %v674 = vshrl.u32 %v673, 7
  %v675 = vsub.s32 3, %v674
  %v676 = vrot.slane %v506, %v675
  %v681 = vadd.f32 %v658, %v664
  %v682 = vadd.f32 %v656, %v668
  %v683 = vadd.f32 %v654, %v672
  %v684 = vadd.f32 %v652, %v676
  %v685 = vadd.f32 %v659, %v664
  %v686 = vadd.f32 %v657, %v668
  %v687 = vadd.f32 %v655, %v672
  %v688 = vadd.f32 %v653, %v676
  %689 = vrot.lane.b32.xlu0 %v627, 112
  %v690 = vpop.permute.xlu0 %689
  %691 = vrot.lane.b32.xlu0 %v631, 112
  %v692 = vpop.permute.xlu0 %691
  %693 = vrot.lane.b32.xlu0 %v628, 112
  %v694 = vpop.permute.xlu0 %693
  %695 = vrot.lane.b32.xlu0 %v632, 112
  %v696 = vpop.permute.xlu0 %695
  %697 = vrot.lane.b32.xlu0 %v629, 112
  %v698 = vpop.permute.xlu0 %697
  %699 = vrot.lane.b32.xlu0 %v633, 112
  %v700 = vpop.permute.xlu0 %699
  %701 = vrot.lane.b32.xlu0 %v630, 112
  %v702 = vpop.permute.xlu0 %701
  %703 = vrot.lane.b32.xlu0 %v634, 112
  %v704 = vpop.permute.xlu0 %703
  %vm705 = vcmp.lt.s32.totalorder %v526, 112
  %v706 = vsel %vm705, %v698, %v702
  %v707 = vsel %vm705, %v700, %v704
  %v708 = vsel %vm705, %v694, %v698
  %v709 = vsel %vm705, %v696, %v700
  %v710 = vsel %vm705, %v690, %v694
  %v711 = vsel %vm705, %v692, %v696
  %v712 = vsel %vm705, %v702, %v690
  %v713 = vsel %vm705, %v704, %v692
  %v715 = vlaneseq
  %v716 = vshrl.u32 %v715, 7
  %v717 = vsub.s32 0, %v716
  %v718 = vrot.slane %v508, %v717
  %v719 = vlaneseq
  %v720 = vshrl.u32 %v719, 7
  %v721 = vsub.s32 1, %v720
  %v722 = vrot.slane %v508, %v721
  %v723 = vlaneseq
  %v724 = vshrl.u32 %v723, 7
  %v725 = vsub.s32 2, %v724
  %v726 = vrot.slane %v508, %v725
  %v727 = vlaneseq
  %v728 = vshrl.u32 %v727, 7
  %v729 = vsub.s32 3, %v728
  %v730 = vrot.slane %v508, %v729
  %v735 = vadd.f32 %v710, %v718
  %v736 = vadd.f32 %v708, %v722
  %v737 = vadd.f32 %v706, %v726
  %v738 = vadd.f32 %v712, %v730
  %v739 = vadd.f32 %v711, %v718
  %v740 = vadd.f32 %v709, %v722
  %v741 = vadd.f32 %v707, %v726
  %v742 = vadd.f32 %v713, %v730
  %v743 = vmax.f32 %v681, %v735
  %v744 = vmax.f32 %v682, %v736
  %v745 = vmax.f32 %v683, %v737
  %v746 = vmax.f32 %v684, %v738
  %v747 = vmax.f32 %v685, %v739
  %v748 = vmax.f32 %v686, %v740
  %v749 = vmax.f32 %v687, %v741
  %v750 = vmax.f32 %v688, %v742
  %v751 = vmax.f32 %v627, %v743
  %v752 = vmax.f32 %v628, %v744
  %v753 = vmax.f32 %v629, %v745
  %v754 = vmax.f32 %v630, %v746
  %v755 = vmax.f32 %v631, %v747
  %v756 = vmax.f32 %v632, %v748
  %v757 = vmax.f32 %v633, %v749
  %v758 = vmax.f32 %v634, %v750
  %759 = vrot.lane.b32.xlu0 %v484, 1
  %v760 = vpop.permute.xlu0 %759
  %761 = vrot.lane.b32.xlu0 %v488, 1
  %v762 = vpop.permute.xlu0 %761
  %763 = vrot.lane.b32.xlu0 %v485, 1
  %v764 = vpop.permute.xlu0 %763
  %765 = vrot.lane.b32.xlu0 %v489, 1
  %v766 = vpop.permute.xlu0 %765
  %767 = vrot.lane.b32.xlu0 %v486, 1
  %v768 = vpop.permute.xlu0 %767
  %769 = vrot.lane.b32.xlu0 %v490, 1
  %v770 = vpop.permute.xlu0 %769
  %771 = vrot.lane.b32.xlu0 %v487, 1
  %v772 = vpop.permute.xlu0 %771
  %773 = vrot.lane.b32.xlu0 %v491, 1
  %v774 = vpop.permute.xlu0 %773
  %v775 = vsel %vm527, %v768, %v772
  %v776 = vsel %vm527, %v770, %v774
  %v777 = vsel %vm527, %v764, %v768
  %v778 = vsel %vm527, %v766, %v770
  %v779 = vsel %vm527, %v760, %v764
  %v780 = vsel %vm527, %v762, %v766
  %v781 = vsel %vm527, %v772, %v760
  %v782 = vsel %vm527, %v774, %v762
  %v784 = vlaneseq
  %v785 = vshrl.u32 %v784, 7
  %v786 = vsub.s32 0, %v785
  %v787 = vrot.slane %v492, %v786
  %v788 = vlaneseq
  %v789 = vshrl.u32 %v788, 7
  %v790 = vsub.s32 1, %v789
  %v791 = vrot.slane %v492, %v790
  %v792 = vlaneseq
  %v793 = vshrl.u32 %v792, 7
  %v794 = vsub.s32 2, %v793
  %v795 = vrot.slane %v492, %v794
  %v796 = vlaneseq
  %v797 = vshrl.u32 %v796, 7
  %v798 = vsub.s32 3, %v797
  %v799 = vrot.slane %v492, %v798
  %v804 = vmul.f32 %v781, %v787
  %v805 = vmul.f32 %v779, %v791
  %v806 = vmul.f32 %v777, %v795
  %v807 = vmul.f32 %v775, %v799
  %v808 = vmul.f32 %v782, %v787
  %v809 = vmul.f32 %v780, %v791
  %v810 = vmul.f32 %v778, %v795
  %v811 = vmul.f32 %v776, %v799
  %v812 = vadd.f32 %v484, %v804
  %v813 = vadd.f32 %v485, %v805
  %v814 = vadd.f32 %v486, %v806
  %v815 = vadd.f32 %v487, %v807
  %v816 = vadd.f32 %v488, %v808
  %v817 = vadd.f32 %v489, %v809
  %v818 = vadd.f32 %v490, %v810
  %v819 = vadd.f32 %v491, %v811
  %820 = vrot.lane.b32.xlu0 %v484, 127
  %v821 = vpop.permute.xlu0 %820
  %822 = vrot.lane.b32.xlu0 %v488, 127
  %v823 = vpop.permute.xlu0 %822
  %824 = vrot.lane.b32.xlu0 %v485, 127
  %v825 = vpop.permute.xlu0 %824
  %826 = vrot.lane.b32.xlu0 %v489, 127
  %v827 = vpop.permute.xlu0 %826
  %828 = vrot.lane.b32.xlu0 %v486, 127
  %v829 = vpop.permute.xlu0 %828
  %830 = vrot.lane.b32.xlu0 %v490, 127
  %v831 = vpop.permute.xlu0 %830
  %832 = vrot.lane.b32.xlu0 %v487, 127
  %v833 = vpop.permute.xlu0 %832
  %834 = vrot.lane.b32.xlu0 %v491, 127
  %v835 = vpop.permute.xlu0 %834
  %v836 = vsel %vm581, %v829, %v833
  %v837 = vsel %vm581, %v831, %v835
  %v838 = vsel %vm581, %v825, %v829
  %v839 = vsel %vm581, %v827, %v831
  %v840 = vsel %vm581, %v821, %v825
  %v841 = vsel %vm581, %v823, %v827
  %v842 = vsel %vm581, %v833, %v821
  %v843 = vsel %vm581, %v835, %v823
  %v845 = vlaneseq
  %v846 = vshrl.u32 %v845, 7
  %v847 = vsub.s32 0, %v846
  %v848 = vrot.slane %v494, %v847
  %v849 = vlaneseq
  %v850 = vshrl.u32 %v849, 7
  %v851 = vsub.s32 1, %v850
  %v852 = vrot.slane %v494, %v851
  %v853 = vlaneseq
  %v854 = vshrl.u32 %v853, 7
  %v855 = vsub.s32 2, %v854
  %v856 = vrot.slane %v494, %v855
  %v857 = vlaneseq
  %v858 = vshrl.u32 %v857, 7
  %v859 = vsub.s32 3, %v858
  %v860 = vrot.slane %v494, %v859
  %v865 = vmul.f32 %v840, %v848
  %v866 = vmul.f32 %v838, %v852
  %v867 = vmul.f32 %v836, %v856
  %v868 = vmul.f32 %v842, %v860
  %v869 = vmul.f32 %v841, %v848
  %v870 = vmul.f32 %v839, %v852
  %v871 = vmul.f32 %v837, %v856
  %v872 = vmul.f32 %v843, %v860
  %v873 = vadd.f32 %v812, %v865
  %v874 = vadd.f32 %v813, %v866
  %v875 = vadd.f32 %v814, %v867
  %v876 = vadd.f32 %v815, %v868
  %v877 = vadd.f32 %v816, %v869
  %v878 = vadd.f32 %v817, %v870
  %v879 = vadd.f32 %v818, %v871
  %v880 = vadd.f32 %v819, %v872
  %881 = vrot.lane.b32.xlu0 %v873, 16
  %v882 = vpop.permute.xlu0 %881
  %883 = vrot.lane.b32.xlu0 %v877, 16
  %v884 = vpop.permute.xlu0 %883
  %885 = vrot.lane.b32.xlu0 %v874, 16
  %v886 = vpop.permute.xlu0 %885
  %887 = vrot.lane.b32.xlu0 %v878, 16
  %v888 = vpop.permute.xlu0 %887
  %889 = vrot.lane.b32.xlu0 %v875, 16
  %v890 = vpop.permute.xlu0 %889
  %891 = vrot.lane.b32.xlu0 %v879, 16
  %v892 = vpop.permute.xlu0 %891
  %893 = vrot.lane.b32.xlu0 %v876, 16
  %v894 = vpop.permute.xlu0 %893
  %895 = vrot.lane.b32.xlu0 %v880, 16
  %v896 = vpop.permute.xlu0 %895
  %v897 = vsel %vm651, %v890, %v894
  %v898 = vsel %vm651, %v892, %v896
  %v899 = vsel %vm651, %v886, %v890
  %v900 = vsel %vm651, %v888, %v892
  %v901 = vsel %vm651, %v882, %v886
  %v902 = vsel %vm651, %v884, %v888
  %v903 = vsel %vm651, %v894, %v882
  %v904 = vsel %vm651, %v896, %v884
  %v906 = vlaneseq
  %v907 = vshrl.u32 %v906, 7
  %v908 = vsub.s32 0, %v907
  %v909 = vrot.slane %v496, %v908
  %v910 = vlaneseq
  %v911 = vshrl.u32 %v910, 7
  %v912 = vsub.s32 1, %v911
  %v913 = vrot.slane %v496, %v912
  %v914 = vlaneseq
  %v915 = vshrl.u32 %v914, 7
  %v916 = vsub.s32 2, %v915
  %v917 = vrot.slane %v496, %v916
  %v918 = vlaneseq
  %v919 = vshrl.u32 %v918, 7
  %v920 = vsub.s32 3, %v919
  %v921 = vrot.slane %v496, %v920
  %v926 = vmul.f32 %v903, %v909
  %v927 = vmul.f32 %v901, %v913
  %v928 = vmul.f32 %v899, %v917
  %v929 = vmul.f32 %v897, %v921
  %v930 = vmul.f32 %v904, %v909
  %v931 = vmul.f32 %v902, %v913
  %v932 = vmul.f32 %v900, %v917
  %v933 = vmul.f32 %v898, %v921
  %v934 = vadd.f32 %v873, %v926
  %v935 = vadd.f32 %v874, %v927
  %v936 = vadd.f32 %v875, %v928
  %v937 = vadd.f32 %v876, %v929
  %v938 = vadd.f32 %v877, %v930
  %v939 = vadd.f32 %v878, %v931
  %v940 = vadd.f32 %v879, %v932
  %v941 = vadd.f32 %v880, %v933
  %942 = vrot.lane.b32.xlu0 %v873, 112
  %v943 = vpop.permute.xlu0 %942
  %944 = vrot.lane.b32.xlu0 %v877, 112
  %v945 = vpop.permute.xlu0 %944
  %946 = vrot.lane.b32.xlu0 %v874, 112
  %v947 = vpop.permute.xlu0 %946
  %948 = vrot.lane.b32.xlu0 %v878, 112
  %v949 = vpop.permute.xlu0 %948
  %950 = vrot.lane.b32.xlu0 %v875, 112
  %v951 = vpop.permute.xlu0 %950
  %952 = vrot.lane.b32.xlu0 %v879, 112
  %v953 = vpop.permute.xlu0 %952
  %954 = vrot.lane.b32.xlu0 %v876, 112
  %v955 = vpop.permute.xlu0 %954
  %956 = vrot.lane.b32.xlu0 %v880, 112
  %v957 = vpop.permute.xlu0 %956
  %v958 = vsel %vm705, %v951, %v955
  %v959 = vsel %vm705, %v953, %v957
  %v960 = vsel %vm705, %v947, %v951
  %v961 = vsel %vm705, %v949, %v953
  %v962 = vsel %vm705, %v943, %v947
  %v963 = vsel %vm705, %v945, %v949
  %v964 = vsel %vm705, %v955, %v943
  %v965 = vsel %vm705, %v957, %v945
  %v967 = vlaneseq
  %v968 = vshrl.u32 %v967, 7
  %v969 = vsub.s32 0, %v968
  %v970 = vrot.slane %v498, %v969
  %v971 = vlaneseq
  %v972 = vshrl.u32 %v971, 7
  %v973 = vsub.s32 1, %v972
  %v974 = vrot.slane %v498, %v973
  %v975 = vlaneseq
  %v976 = vshrl.u32 %v975, 7
  %v977 = vsub.s32 2, %v976
  %v978 = vrot.slane %v498, %v977
  %v979 = vlaneseq
  %v980 = vshrl.u32 %v979, 7
  %v981 = vsub.s32 3, %v980
  %v982 = vrot.slane %v498, %v981
  %v987 = vmul.f32 %v962, %v970
  %v988 = vmul.f32 %v960, %v974
  %v989 = vmul.f32 %v958, %v978
  %v990 = vmul.f32 %v964, %v982
  %v991 = vmul.f32 %v963, %v970
  %v992 = vmul.f32 %v961, %v974
  %v993 = vmul.f32 %v959, %v978
  %v994 = vmul.f32 %v965, %v982
  %v995 = vadd.f32 %v934, %v987
  %v996 = vadd.f32 %v935, %v988
  %v997 = vadd.f32 %v936, %v989
  %v998 = vadd.f32 %v937, %v990
  %v999 = vadd.f32 %v938, %v991
  %v1000 = vadd.f32 %v939, %v992
  %v1001 = vadd.f32 %v940, %v993
  %v1002 = vadd.f32 %v941, %v994
  %v1004 = vlaneseq
  %v1005 = vshrl.u32 %v1004, 7
  %v1006 = vsub.s32 0, %v1005
  %v1007 = vrot.slane %v500, %v1006
  %v1008 = vlaneseq
  %v1009 = vshrl.u32 %v1008, 7
  %v1010 = vsub.s32 1, %v1009
  %v1011 = vrot.slane %v500, %v1010
  %v1012 = vlaneseq
  %v1013 = vshrl.u32 %v1012, 7
  %v1014 = vsub.s32 2, %v1013
  %v1015 = vrot.slane %v500, %v1014
  %v1016 = vlaneseq
  %v1017 = vshrl.u32 %v1016, 7
  %v1018 = vsub.s32 3, %v1017
  %v1019 = vrot.slane %v500, %v1018
  %v1024 = vmul.f32 %v995, %v1007
  %v1025 = vmul.f32 %v996, %v1011
  %v1026 = vmul.f32 %v997, %v1015
  %v1027 = vmul.f32 %v998, %v1019
  %v1028 = vmul.f32 %v999, %v1007
  %v1029 = vmul.f32 %v1000, %v1011
  %v1030 = vmul.f32 %v1001, %v1015
  %v1031 = vmul.f32 %v1002, %v1019
  %v1032 = vadd.f32 %v751, %v1024
  %v1033 = vadd.f32 %v752, %v1025
  %v1034 = vadd.f32 %v753, %v1026
  %v1035 = vadd.f32 %v754, %v1027
  %v1036 = vadd.f32 %v755, %v1028
  %v1037 = vadd.f32 %v756, %v1029
  %v1038 = vadd.f32 %v757, %v1030
  %v1039 = vadd.f32 %v758, %v1031
  %v1040 = vadd.f32 %v239, %v1024
  %v1041 = vadd.f32 %v240, %v1025
  %v1042 = vadd.f32 %v241, %v1026
  %v1043 = vadd.f32 %v242, %v1027
  %v1044 = vadd.f32 %v243, %v1028
  %v1045 = vadd.f32 %v244, %v1029
  %v1046 = vadd.f32 %v245, %v1030
  %v1047 = vadd.f32 %v246, %v1031
  %v1048 = vmax.f32 %v1032, 0.0
  %v1049 = vmax.f32 %v1033, 0.0
  %v1050 = vmax.f32 %v1034, 0.0
  %v1051 = vmax.f32 %v1035, 0.0
  %v1052 = vmax.f32 %v1036, 0.0
  %v1053 = vmax.f32 %v1037, 0.0
  %v1054 = vmax.f32 %v1038, 0.0
  %v1055 = vmax.f32 %v1039, 0.0
  %v1056 = vmax.f32 %v1040, 0.0
  %v1057 = vmax.f32 %v1041, 0.0
  %v1058 = vmax.f32 %v1042, 0.0
  %v1059 = vmax.f32 %v1043, 0.0
  %v1060 = vmax.f32 %v1044, 0.0
  %v1061 = vmax.f32 %v1045, 0.0
  %v1062 = vmax.f32 %v1046, 0.0
  %v1063 = vmax.f32 %v1047, 0.0
  %v1064 = vld [vmem:[%s5] sm:$0xff]
  %v1065 = vld [vmem:[%s5 + $0x8] sm:$0xff]
  %vm1066 = vcmask 261120
  %v1068 = vsel %vm1066, %v1064, 0
  %v1071 = vsel %vm1066, %v1065, 0
  %1073 = vmatprep.subr.mxu0 0.0
  %1074 = vmatpush1.msra.mxu0 0.0
  %1075 = vmatprep.subr.mxu0 0.0
  %1076 = vmatpush1.msra.mxu0 0.0
  %1077 = vmatprep.subr.mxu0 0.0
  %1078 = vmatpush1.msra.mxu0 0.0
  %1079 = vmatprep.subr.mxu0 0.0
  %1080 = vmatpush1.msra.mxu0 0.0
  %1081 = vmatprep.subr.mxu0 0.0
  %1082 = vmatpush1.msra.mxu0 0.0
  %1083 = vmatprep.subr.mxu0 0.0
  %1084 = vmatpush1.msra.mxu0 0.0
  %1085 = vmatprep.subr.mxu0 0.0
  %1086 = vmatpush1.msra.mxu0 0.0
  %1087 = vmatprep.subr.mxu0 0.0
  %1088 = vmatpush1.msra.mxu0 0.0
  %1089 = vmatprep.subr.mxu0 0.0
  %1090 = vmatpush1.msra.mxu0 0.0
  %1091 = vmatprep.subr.mxu0 0.0
  %1092 = vmatpush1.msra.mxu0 0.0
  %1093 = vmatprep.subr.mxu0 0.0
  %1094 = vmatpush1.msra.mxu0 0.0
  %1095 = vmatprep.subr.mxu0 0.0
  %1096 = vmatpush1.msra.mxu0 0.0
  %1097 = vmatprep.subr.mxu0 %v1061
  %1098 = vmatpush1.msra.mxu0 %v1060
  %1099 = vmatprep.subr.mxu0 %v1057
  %1100 = vmatpush1.msra.mxu0 %v1056
  %1101 = vmatprep.subr.mxu0 %v1053
  %1102 = vmatpush1.msra.mxu0 %v1052
  %1103 = vmatprep.subr.mxu0 %v1049
  %1104 = vmatpush1.msra.mxu0 %v1048
  %1105 = vmatprep.subr.mxu0 0.0
  %1106 = vmatpush2.msra.mxu0 0.0
  %1107 = vmatprep.subr.mxu0 0.0
  %1108 = vmatpush2.msra.mxu0 0.0
  %1109 = vmatprep.subr.mxu0 0.0
  %1110 = vmatpush2.msra.mxu0 0.0
  %1111 = vmatprep.subr.mxu0 0.0
  %1112 = vmatpush2.msra.mxu0 0.0
  %1113 = vmatprep.subr.mxu0 0.0
  %1114 = vmatpush2.msra.mxu0 0.0
  %1115 = vmatprep.subr.mxu0 0.0
  %1116 = vmatpush2.msra.mxu0 0.0
  %1117 = vmatprep.subr.mxu0 0.0
  %1118 = vmatpush2.msra.mxu0 0.0
  %1119 = vmatprep.subr.mxu0 0.0
  %1120 = vmatpush2.msra.mxu0 0.0
  %1121 = vmatprep.subr.mxu0 0.0
  %1122 = vmatpush2.msra.mxu0 0.0
  %1123 = vmatprep.subr.mxu0 0.0
  %1124 = vmatpush2.msra.mxu0 0.0
  %1125 = vmatprep.subr.mxu0 0.0
  %1126 = vmatpush2.msra.mxu0 0.0
  %1127 = vmatprep.subr.mxu0 0.0
  %1128 = vmatpush2.msra.mxu0 0.0
  %1129 = vmatprep.subr.mxu0 0.0
  %1130 = vmatpush2.msra.mxu0 0.0
  %1131 = vmatprep.subr.mxu0 0.0
  %1132 = vmatpush2.msra.mxu0 0.0
  %1133 = vmatprep.subr.mxu0 0.0
  %1134 = vmatpush2.msra.mxu0 0.0
  %1135 = vmatprep.subr.mxu0 0.0
  %1136 = vmatpush2.msra.mxu0 0.0
  %1137 = vmatprep.mubr.f32.mxu0 0.0
  %1138 = vmatmul.mubr.f32.gmra.mxu0 %v1068
  %v1139 = vpop.f32.mrf.mxu0
  %v1140 = vadd.f32 0.0, %v1139
  %v1141 = vpop.f32.mrf.mxu0
  %v1142 = vadd.f32 0.0, %v1141
  %1143 = vmatprep.mubr.f32.mxu0 0.0
  %1144 = vmatmul.mubr.f32.gmra.mxu0 %v1071
  %v1145 = vpop.f32.mrf.mxu0
  %v1146 = vadd.f32 0.0, %v1145
  %v1147 = vpop.f32.mrf.mxu0
  %v1148 = vadd.f32 0.0, %v1147
  %1149 = vdwg.mxu0
  %1150 = vmatprep.subr.mxu0 0.0
  %1151 = vmatpush1.msra.mxu0 0.0
  %1152 = vmatprep.subr.mxu0 0.0
  %1153 = vmatpush1.msra.mxu0 0.0
  %1154 = vmatprep.subr.mxu0 0.0
  %1155 = vmatpush1.msra.mxu0 0.0
  %1156 = vmatprep.subr.mxu0 0.0
  %1157 = vmatpush1.msra.mxu0 0.0
  %1158 = vmatprep.subr.mxu0 0.0
  %1159 = vmatpush1.msra.mxu0 0.0
  %1160 = vmatprep.subr.mxu0 0.0
  %1161 = vmatpush1.msra.mxu0 0.0
  %1162 = vmatprep.subr.mxu0 0.0
  %1163 = vmatpush1.msra.mxu0 0.0
  %1164 = vmatprep.subr.mxu0 0.0
  %1165 = vmatpush1.msra.mxu0 0.0
  %1166 = vmatprep.subr.mxu0 0.0
  %1167 = vmatpush1.msra.mxu0 0.0
  %1168 = vmatprep.subr.mxu0 0.0
  %1169 = vmatpush1.msra.mxu0 0.0
  %1170 = vmatprep.subr.mxu0 0.0
  %1171 = vmatpush1.msra.mxu0 0.0
  %1172 = vmatprep.subr.mxu0 0.0
  %1173 = vmatpush1.msra.mxu0 0.0
  %1174 = vmatprep.subr.mxu0 %v1063
  %1175 = vmatpush1.msra.mxu0 %v1062
  %1176 = vmatprep.subr.mxu0 %v1059
  %1177 = vmatpush1.msra.mxu0 %v1058
  %1178 = vmatprep.subr.mxu0 %v1055
  %1179 = vmatpush1.msra.mxu0 %v1054
  %1180 = vmatprep.subr.mxu0 %v1051
  %1181 = vmatpush1.msra.mxu0 %v1050
  %1182 = vmatprep.subr.mxu0 0.0
  %1183 = vmatpush2.msra.mxu0 0.0
  %1184 = vmatprep.subr.mxu0 0.0
  %1185 = vmatpush2.msra.mxu0 0.0
  %1186 = vmatprep.subr.mxu0 0.0
  %1187 = vmatpush2.msra.mxu0 0.0
  %1188 = vmatprep.subr.mxu0 0.0
  %1189 = vmatpush2.msra.mxu0 0.0
  %1190 = vmatprep.subr.mxu0 0.0
  %1191 = vmatpush2.msra.mxu0 0.0
  %1192 = vmatprep.subr.mxu0 0.0
  %1193 = vmatpush2.msra.mxu0 0.0
  %1194 = vmatprep.subr.mxu0 0.0
  %1195 = vmatpush2.msra.mxu0 0.0
  %1196 = vmatprep.subr.mxu0 0.0
  %1197 = vmatpush2.msra.mxu0 0.0
  %1198 = vmatprep.subr.mxu0 0.0
  %1199 = vmatpush2.msra.mxu0 0.0
  %1200 = vmatprep.subr.mxu0 0.0
  %1201 = vmatpush2.msra.mxu0 0.0
  %1202 = vmatprep.subr.mxu0 0.0
  %1203 = vmatpush2.msra.mxu0 0.0
  %1204 = vmatprep.subr.mxu0 0.0
  %1205 = vmatpush2.msra.mxu0 0.0
  %1206 = vmatprep.subr.mxu0 0.0
  %1207 = vmatpush2.msra.mxu0 0.0
  %1208 = vmatprep.subr.mxu0 0.0
  %1209 = vmatpush2.msra.mxu0 0.0
  %1210 = vmatprep.subr.mxu0 0.0
  %1211 = vmatpush2.msra.mxu0 0.0
  %1212 = vmatprep.subr.mxu0 0.0
  %1213 = vmatpush2.msra.mxu0 0.0
  %1214 = vmatprep.mubr.f32.mxu0 0.0
  %1215 = vmatmul.mubr.f32.gmra.mxu0 %v1068
  %v1216 = vpop.f32.mrf.mxu0
  %v1217 = vadd.f32 0.0, %v1216
  %v1218 = vpop.f32.mrf.mxu0
  %v1219 = vadd.f32 0.0, %v1218
  %1220 = vmatprep.mubr.f32.mxu0 0.0
  %1221 = vmatmul.mubr.f32.gmra.mxu0 %v1071
  %v1222 = vpop.f32.mrf.mxu0
  %v1223 = vadd.f32 0.0, %v1222
  %v1224 = vpop.f32.mrf.mxu0
  %v1225 = vadd.f32 0.0, %v1224
  %1226 = vdwg.mxu0
  %v1227 = vadd.f32 %v1140, %v1142
  %v1228 = vadd.f32 %v1227, %v1217
  %v1229 = vadd.f32 %v1228, %v1219
  %1230 = vadd.xlane.f32.xlu0 %v1229
  %v1231 = vpop.xlane.xlu0 %1230
  %v1232 = vadd.f32 %v1146, %v1148
  %v1233 = vadd.f32 %v1232, %v1223
  %v1234 = vadd.f32 %v1233, %v1225
  %1235 = vadd.xlane.f32.xlu0 %v1234
  %v1236 = vpop.xlane.xlu0 %1235
  %v1237 = vmul.f32 %v1231, 0.001953125
  %v1238 = vmul.f32 %v1236, 0.001953125
  %v1239 = vsub.f32 %v1140, %v1237
  %v1240 = vsub.f32 %v1142, %v1237
  %v1241 = vsub.f32 %v1217, %v1237
  %v1242 = vsub.f32 %v1219, %v1237
  %v1243 = vsub.f32 %v1146, %v1238
  %v1244 = vsub.f32 %v1148, %v1238
  %v1245 = vsub.f32 %v1223, %v1238
  %v1246 = vsub.f32 %v1225, %v1238
  %v1247 = vmul.f32 %v1239, %v1239
  %v1248 = vmul.f32 %v1240, %v1240
  %v1249 = vmul.f32 %v1241, %v1241
  %v1250 = vmul.f32 %v1242, %v1242
  %v1251 = vmul.f32 %v1243, %v1243
  %v1252 = vmul.f32 %v1244, %v1244
  %v1253 = vmul.f32 %v1245, %v1245
  %v1254 = vmul.f32 %v1246, %v1246
  %v1255 = vadd.f32 %v1247, %v1248
  %v1256 = vadd.f32 %v1255, %v1249
  %v1257 = vadd.f32 %v1256, %v1250
  %1258 = vadd.xlane.f32.xlu0 %v1257
  %v1259 = vpop.xlane.xlu0 %1258
  %v1260 = vadd.f32 %v1251, %v1252
  %v1261 = vadd.f32 %v1260, %v1253
  %v1262 = vadd.f32 %v1261, %v1254
  %1263 = vadd.xlane.f32.xlu0 %v1262
  %v1264 = vpop.xlane.xlu0 %1263
  %v1265 = vmul.f32 %v1259, 0.001953125
  %v1266 = vmul.f32 %v1264, 0.001953125
  %v1267 = vadd.f32 %v1265, 1e-05
  %v1268 = vadd.f32 %v1266, 1e-05
  %v1269 = vrsqrt.pop %v1267
  %v1270 = vrsqrt.pop %v1268
  %v1271 = vmul.f32 %v1239, %v1269
  %v1272 = vmul.f32 %v1240, %v1269
  %v1273 = vmul.f32 %v1241, %v1269
  %v1274 = vmul.f32 %v1242, %v1269
  %v1275 = vmul.f32 %v1243, %v1270
  %v1276 = vmul.f32 %v1244, %v1270
  %v1277 = vmul.f32 %v1245, %v1270
  %v1278 = vmul.f32 %v1246, %v1270
  %1279 = vst [vmem:[%s6] sm:$0xff] %v1271
  %1280 = vst [vmem:[%s6 + $0x8] sm:$0xff] %v1272
  %1281 = vst [vmem:[%s6 + $0x10] sm:$0xff] %v1275
  %1282 = vst [vmem:[%s6 + $0x18] sm:$0xff] %v1276
  %s1283 = scalar_lea.vmem %s6, 32
  %1284 = vst [vmem:[%s1283] sm:$0xff] %v1273
  %1285 = vst [vmem:[%s1283 + $0x8] sm:$0xff] %v1274
  %1286 = vst [vmem:[%s1283 + $0x10] sm:$0xff] %v1277
  %1287 = vst [vmem:[%s1283 + $0x18] sm:$0xff] %v1278
  // Predicated region
  $region26: #{_lambda_.1} parent=0 // pred_check
    _
  $region27: #{_lambda_.1} parent=0 // pred_check_branch
    %1289 = sbr.rel (0) target = $region29
  $region28: #{_lambda_.1} parent=0 // pred_region
    _
  $region29: #{_lambda_.1} parent=0 // pred_fallthru
    _
  // Predicated region
  $region30: #{_lambda_.1} parent=0 // pred_check
    _
  $region31: #{_lambda_.1} parent=0 // pred_check_branch
    %1291 = sbr.rel (0) target = $region33
  $region32: #{_lambda_.1} parent=0 // pred_region
    _
  $region33: #{_lambda_.1} parent=0 // pred_fallthru
    _

</llo_original>
